<compile_context>
chip_gen: v5e
topology: v5e:2x2
jax: 0.10.0
libtpu: 0.0.40
codegen_flags: <defaults>
</compile_context>

<pallas_src>
import math
import functools

import numpy as np
import jax
import jax.numpy as jnp
from jax.experimental import pallas as pl
from jax.experimental.pallas import tpu as pltpu

BN_EPS = 1e-5
LEAKY_SLOPE = 0.01  # nn.LeakyReLU default
LANE = 128


# ---------------------------------------------------------------------------
# Pallas kernel: whole ICM forward (fused feature encoder, inverse model,
# forward model) in one VMEM-resident block.
# ---------------------------------------------------------------------------
def icm_kernel(B, P, states_ref, action_ref, w_ref, b_ref,
               real_ref, pred_ns_ref, pred_act_ref):
    """Fused ICM forward.

    states_ref : (2B, P) bf16  rows [0:B]=state, rows [B:2B]=next_state
    action_ref : (B, P)  bf16
    w_ref      : (11, P, P) bf16 packed, zero-padded, pre-transposed weights
                 [fw1, fw2, fw3, iw1_s, iw1_ns, iw2, iw3, pw1_s, pw1_act, pw2, pw3]
    b_ref      : (9, P) f32 packed, zero-padded biases
                 [fb1, fb2, fb3, ib1, ib2, ib3, pb1, pb2, pb3]
    outputs    : (B, P) f32 each (lane-dense; wrapper slices valid columns)
    """
    bf16 = jnp.bfloat16

    def dot(a, b):  # bf16 x bf16 on the MXU, f32 accumulation
        return jnp.dot(a, b, preferred_element_type=jnp.float32)

    def lrelu(x):
        return jnp.where(x > 0, x, LEAKY_SLOPE * x)

    def bias(i):  # (1, P) f32 static slice of the packed bias table
        return b_ref[i:i + 1, :]

    def bn_per_half(x):
        # BatchNorm1d (train mode, gamma=1, beta=0, biased variance), with
        # statistics computed separately for the state half and the
        # next_state half.  Single fused pass: var = E[x^2] - mu^2.
        x3 = x.reshape(2, B, P)
        mu = jnp.mean(x3, axis=1, keepdims=True)
        msq = jnp.mean(x3 * x3, axis=1, keepdims=True)
        var = jnp.maximum(msq - mu * mu, 0.0)
        y = (x3 - mu) * jax.lax.rsqrt(var + BN_EPS)
        return y.reshape(2 * B, P)

    # ---- feature encoder, fused over [state ; next_state] (one 2B-row pass) ----
    x = states_ref[...]                                              # (2B, P) bf16
    h = bn_per_half(lrelu(dot(x, w_ref[0]) + bias(0)))
    h = bn_per_half(lrelu(dot(h.astype(bf16), w_ref[1]) + bias(1)))
    enc = bn_per_half(dot(h.astype(bf16), w_ref[2]) + bias(2))       # (2B, P) f32

    enc_s = enc[:B, :]
    enc_ns = enc[B:, :]
    real_ref[...] = enc_ns                                           # real_next_state_feature

    enc_s16 = enc_s.astype(bf16)
    enc_ns16 = enc_ns.astype(bf16)

    # ---- inverse model: cat([enc_s, enc_ns]) @ W == enc_s @ W_s + enc_ns @ W_ns ----
    h = jnp.maximum(dot(enc_s16, w_ref[3]) + dot(enc_ns16, w_ref[4]) + bias(3), 0.0)
    h = jnp.maximum(dot(h.astype(bf16), w_ref[5]) + bias(4), 0.0)
    pred_act_ref[...] = dot(h.astype(bf16), w_ref[6]) + bias(5)

    # ---- forward model: cat([enc_s, action]) @ W == enc_s @ W_s + action @ W_a ----
    act = action_ref[...]
    h = lrelu(dot(enc_s16, w_ref[7]) + dot(act, w_ref[8]) + bias(6))
    h = lrelu(dot(h.astype(bf16), w_ref[9]) + bias(7))
    pred_ns_ref[...] = dot(h.astype(bf16), w_ref[10]) + bias(8)


# ---------------------------------------------------------------------------
# Wrapper: pad to 128 lanes, pack weights/biases, launch kernel, slice back.
# ---------------------------------------------------------------------------
def _pad_mat(w, rows, cols):
    r, c = w.shape
    return jnp.pad(w, ((0, rows - r), (0, cols - c)))


def _pad_vec(b, n):
    return jnp.pad(b, (0, n - b.shape[0]))


def _round_up(x, m):
    return m * ((x + m - 1) // m)


def icm_forward(state, next_state, action, params):
    B = state.shape[0]
    in_dim, hid = params["fw1"].shape
    feat = params["fw3"].shape[1]
    out_dim = params["iw3"].shape[1]

    # Common lane-padded width (multiple of 128).
    P = _round_up(max(in_dim, hid, feat, out_dim), LANE)

    # Pack weights into one (11, P, P) bf16 slab.  The first-layer weights of
    # the inverse/forward models are split at the concat boundary so the
    # kernel can take static ref slices instead of concatenating activations.
    iw1, pw1 = params["iw1"], params["pw1"]
    w_blocks = [
        params["fw1"], params["fw2"], params["fw3"],
        iw1[:feat], iw1[feat:],
        params["iw2"], params["iw3"],
        pw1[:feat], pw1[feat:],
        params["pw2"], params["pw3"],
    ]
    w_packed = jnp.stack([_pad_mat(w, P, P) for w in w_blocks],
                         axis=0).astype(jnp.bfloat16)                # (11, P, P)

    b_packed = jnp.stack(
        [_pad_vec(params[k], P) for k in
         ("fb1", "fb2", "fb3", "ib1", "ib2", "ib3", "pb1", "pb2", "pb3")],
        axis=0).astype(jnp.float32)                                  # (9, P)

    # Activations: pad lanes to P, stack state/next_state, cast to bf16.
    states = jnp.concatenate(
        [_pad_mat(state, B, P), _pad_mat(next_state, B, P)], axis=0
    ).astype(jnp.bfloat16)                                           # (2B, P)
    action_p = _pad_mat(action, B, P).astype(jnp.bfloat16)           # (B, P)

    kernel = functools.partial(icm_kernel, B, P)
    out_shape = tuple(jax.ShapeDtypeStruct((B, P), jnp.float32) for _ in range(3))

    real_p, pred_ns_p, pred_act_p = pl.pallas_call(
        kernel,
        grid=(1,),
        in_specs=[
            pl.BlockSpec((2 * B, P), lambda i: (0, 0)),
            pl.BlockSpec((B, P), lambda i: (0, 0)),
            pl.BlockSpec((11, P, P), lambda i: (0, 0, 0)),
            pl.BlockSpec((9, P), lambda i: (0, 0)),
        ],
        out_specs=tuple(pl.BlockSpec((B, P), lambda i: (0, 0)) for _ in range(3)),
        out_shape=out_shape,
        compiler_params=pltpu.CompilerParams(
            dimension_semantics=("arbitrary",)),
    )(states, action_p, w_packed, b_packed)

    # Slice the zero-padded lanes back off.
    return real_p[:, :feat], pred_ns_p[:, :feat], pred_act_p[:, :out_dim]


# ---------------------------------------------------------------------------
# Deterministic parameter init (mirrors kaiming_uniform_(a=1.0), zero bias)
# ---------------------------------------------------------------------------
def _kaiming_uniform(key, out_f, in_f, a=1.0):
    bound = math.sqrt(6.0 / ((1.0 + a * a) * in_f))
    w = jax.random.uniform(key, (out_f, in_f), jnp.float32, -bound, bound)
    return w.T  # (in, out) so the kernel computes x @ W + b


def init_params(key, input_size, feature_size, hidden_size, output_size):
    keys = jax.random.split(key, 9)
    p = {}
    # feature MLP
    p["fw1"] = _kaiming_uniform(keys[0], hidden_size, input_size)
    p["fb1"] = jnp.zeros((hidden_size,), jnp.float32)
    p["fw2"] = _kaiming_uniform(keys[1], hidden_size, hidden_size)
    p["fb2"] = jnp.zeros((hidden_size,), jnp.float32)
    p["fw3"] = _kaiming_uniform(keys[2], feature_size, hidden_size)
    p["fb3"] = jnp.zeros((feature_size,), jnp.float32)
    # inverse model
    p["iw1"] = _kaiming_uniform(keys[3], hidden_size, 2 * feature_size)
    p["ib1"] = jnp.zeros((hidden_size,), jnp.float32)
    p["iw2"] = _kaiming_uniform(keys[4], hidden_size, hidden_size)
    p["ib2"] = jnp.zeros((hidden_size,), jnp.float32)
    p["iw3"] = _kaiming_uniform(keys[5], output_size, hidden_size)
    p["ib3"] = jnp.zeros((output_size,), jnp.float32)
    # forward model
    p["pw1"] = _kaiming_uniform(keys[6], hidden_size, output_size + feature_size)
    p["pb1"] = jnp.zeros((hidden_size,), jnp.float32)
    p["pw2"] = _kaiming_uniform(keys[7], hidden_size, hidden_size)
    p["pb2"] = jnp.zeros((hidden_size,), jnp.float32)
    p["pw3"] = _kaiming_uniform(keys[8], feature_size, hidden_size)
    p["pb3"] = jnp.zeros((feature_size,), jnp.float32)
    return p


# ---------------------------------------------------------------------------
# Pure-JAX reference.  mxu_bf16=True mirrors the kernel's dtype policy
# (bf16 matmul operands, f32 accumulation / BN); False is the straight f32
# PyTorch-equivalent forward.
# ---------------------------------------------------------------------------
def ref_forward(state, next_state, action, p, mxu_bf16=True):
    if mxu_bf16:
        def dot(a, b):
            return jnp.dot(a.astype(jnp.bfloat16), b.astype(jnp.bfloat16),
                           preferred_element_type=jnp.float32)
    else:
        def dot(a, b):
            return jnp.dot(a, b, precision=jax.lax.Precision.HIGHEST)

    def bn(x):
        mu = x.mean(0, keepdims=True)
        var = jnp.maximum((x * x).mean(0, keepdims=True) - mu * mu, 0.0)
        return (x - mu) * jax.lax.rsqrt(var + BN_EPS)

    lrelu = lambda x: jnp.where(x > 0, x, LEAKY_SLOPE * x)
    relu = lambda x: jnp.maximum(x, 0.0)

    def feat(x):
        h = bn(lrelu(dot(x, p["fw1"]) + p["fb1"]))
        h = bn(lrelu(dot(h, p["fw2"]) + p["fb2"]))
        return bn(dot(h, p["fw3"]) + p["fb3"])

    es, ens = feat(state), feat(next_state)

    h = relu(dot(jnp.concatenate([es, ens], axis=1), p["iw1"]) + p["ib1"])
    h = relu(dot(h, p["iw2"]) + p["ib2"])
    pred_action = dot(h, p["iw3"]) + p["ib3"]

    h = lrelu(dot(jnp.concatenate([es, action], axis=1), p["pw1"]) + p["pb1"])
    h = lrelu(dot(h, p["pw2"]) + p["pb2"])
    pred_ns = dot(h, p["pw3"]) + p["pb3"]
    return ens, pred_ns, pred_action


if __name__ == "__main__":
    B = 64                 # multiple of 8 so the per-half BN reshape is tile-aligned
    input_size = 16
    feature_size = 32
    hidden_size = 32
    output_size = 8

    key = jax.random.PRNGKey(0)
    k_state, k_next, k_act, k_params = jax.random.split(key, 4)

    state = jax.random.normal(k_state, (B, input_size), jnp.float32)
    next_state = jax.random.normal(k_next, (B, input_size), jnp.float32)
    action = jax.random.normal(k_act, (B, output_size), jnp.float32)

    params = init_params(k_params, input_size, feature_size, hidden_size, output_size)

    real_ns, pred_ns, pred_act = icm_forward(state, next_state, action, params)
    jax.block_until_ready((real_ns, pred_ns, pred_act))

    assert real_ns.shape == (B, feature_size)
    assert pred_ns.shape == (B, feature_size)
    assert pred_act.shape == (B, output_size)

    # Tight check against the precision-matched reference (same bf16 MXU
    # policy as the kernel).
    r_real, r_pred_ns, r_pred_act = ref_forward(state, next_state, action,
                                                params, mxu_bf16=True)
    np.testing.assert_allclose(np.asarray(real_ns), np.asarray(r_real), rtol=1e-2, atol=1e-2)
    np.testing.assert_allclose(np.asarray(pred_ns), np.asarray(r_pred_ns), rtol=1e-2, atol=1e-2)
    np.testing.assert_allclose(np.asarray(pred_act), np.asarray(r_pred_act), rtol=1e-2, atol=1e-2)

    # Loose sanity check against the full-f32 PyTorch-equivalent forward
    # (bf16 matmul operands introduce ~1% deviation by design).
    f_real, f_pred_ns, f_pred_act = ref_forward(state, next_state, action,
                                                params, mxu_bf16=False)
    np.testing.assert_allclose(np.asarray(real_ns), np.asarray(f_real), rtol=0.25, atol=0.25)
    np.testing.assert_allclose(np.asarray(pred_ns), np.asarray(f_pred_ns), rtol=0.25, atol=0.25)
    np.testing.assert_allclose(np.asarray(pred_act), np.asarray(f_pred_act), rtol=0.25, atol=0.25)

    print("KERNEL_OK")
</pallas_src>

<mosaic_0001>
module attributes {stable_mosaic.version = 11 : i64} {
  func.func @icm_kernel(%arg0: i32, %arg1: memref<128x128xbf16, #tpu.memory_space<vmem>>, %arg2: memref<64x128xbf16, #tpu.memory_space<vmem>>, %arg3: memref<11x128x128xbf16, #tpu.memory_space<vmem>>, %arg4: memref<9x128xf32, #tpu.memory_space<vmem>>, %arg5: memref<64x128xf32, #tpu.memory_space<vmem>>, %arg6: memref<64x128xf32, #tpu.memory_space<vmem>>, %arg7: memref<64x128xf32, #tpu.memory_space<vmem>>) attributes {dimension_semantics = [#tpu.dimension_semantics<arbitrary>], iteration_bounds = array<i64: 1>, scalar_prefetch = 0 : i64, scratch_operands = 0 : i64, tpu.core_type = #tpu.core_type<tc>, window_params = [{pipeline_mode = #tpu.pipeline_mode<synchronous>, transform_indices = @transform_0, window_bounds = array<i64: 128, 128>}, {pipeline_mode = #tpu.pipeline_mode<synchronous>, transform_indices = @transform_1, window_bounds = array<i64: 64, 128>}, {pipeline_mode = #tpu.pipeline_mode<synchronous>, transform_indices = @transform_2, window_bounds = array<i64: 11, 128, 128>}, {pipeline_mode = #tpu.pipeline_mode<synchronous>, transform_indices = @transform_3, window_bounds = array<i64: 9, 128>}, {pipeline_mode = #tpu.pipeline_mode<synchronous>, transform_indices = @transform_4, window_bounds = array<i64: 64, 128>}, {pipeline_mode = #tpu.pipeline_mode<synchronous>, transform_indices = @transform_5, window_bounds = array<i64: 64, 128>}, {pipeline_mode = #tpu.pipeline_mode<synchronous>, transform_indices = @transform_6, window_bounds = array<i64: 64, 128>}]} {
    %c0 = arith.constant 0 : index
    %c0_0 = arith.constant 0 : index
    %0 = vector.load %arg1[%c0, %c0_0] : memref<128x128xbf16, #tpu.memory_space<vmem>>, vector<128x128xbf16>
    %c0_1 = arith.constant 0 : index
    %c0_2 = arith.constant 0 : index
    %c0_3 = arith.constant 0 : index
    %1 = vector.load %arg3[%c0_1, %c0_2, %c0_3] : memref<11x128x128xbf16, #tpu.memory_space<vmem>>, vector<1x128x128xbf16>
    %2 = vector.shape_cast %1 : vector<1x128x128xbf16> to vector<128x128xbf16>
    %cst = arith.constant dense<0.000000e+00> : vector<128x128xf32>
    %3 = tpu.matmul %0, %2, %cst {dimension_numbers = #tpu.dot_dimension_numbers<[1], [0], [0], [1], [0, 0, 1, 1], [], []>} : vector<128x128xbf16>, vector<128x128xbf16>, vector<128x128xf32> -> vector<128x128xf32>
    %c0_4 = arith.constant 0 : index
    %c0_5 = arith.constant 0 : index
    %4 = vector.load %arg4[%c0_4, %c0_5] : memref<9x128xf32, #tpu.memory_space<vmem>>, vector<1x128xf32>
    %5 = vector.broadcast %4 : vector<1x128xf32> to vector<128x128xf32>
    %6 = arith.addf %3, %5 : vector<128x128xf32>
    %cst_6 = arith.constant 0.000000e+00 : f32
    %7 = vector.broadcast %cst_6 : f32 to vector<128x128xf32>
    %8 = arith.cmpf ogt, %6, %7 : vector<128x128xf32>
    %cst_7 = arith.constant 0.00999999977 : f32
    %9 = vector.broadcast %cst_7 : f32 to vector<128x128xf32>
    %10 = arith.mulf %9, %6 : vector<128x128xf32>
    %11 = arith.select %8, %6, %10 : vector<128x128xi1>, vector<128x128xf32>
    %12 = vector.shape_cast %11 : vector<128x128xf32> to vector<2x64x128xf32>
    %cst_8 = arith.constant dense<0.000000e+00> : vector<2x128xf32>
    %13 = vector.multi_reduction <add>, %12, %cst_8 [1] : vector<2x64x128xf32> to vector<2x128xf32>
    %14 = vector.shape_cast %13 : vector<2x128xf32> to vector<2x1x128xf32>
    %cst_9 = arith.constant 6.400000e+01 : f32
    %15 = vector.broadcast %cst_9 : f32 to vector<2x1x128xf32>
    %16 = arith.divf %14, %15 : vector<2x1x128xf32>
    %17 = arith.mulf %12, %12 : vector<2x64x128xf32>
    %cst_10 = arith.constant dense<0.000000e+00> : vector<2x128xf32>
    %18 = vector.multi_reduction <add>, %17, %cst_10 [1] : vector<2x64x128xf32> to vector<2x128xf32>
    %19 = vector.shape_cast %18 : vector<2x128xf32> to vector<2x1x128xf32>
    %cst_11 = arith.constant 6.400000e+01 : f32
    %20 = vector.broadcast %cst_11 : f32 to vector<2x1x128xf32>
    %21 = arith.divf %19, %20 : vector<2x1x128xf32>
    %22 = arith.mulf %16, %16 : vector<2x1x128xf32>
    %23 = arith.subf %21, %22 : vector<2x1x128xf32>
    %cst_12 = arith.constant 0.000000e+00 : f32
    %24 = vector.broadcast %cst_12 : f32 to vector<2x1x128xf32>
    %25 = arith.maximumf %23, %24 : vector<2x1x128xf32>
    %26 = vector.broadcast %16 : vector<2x1x128xf32> to vector<2x64x128xf32>
    %27 = arith.subf %12, %26 : vector<2x64x128xf32>
    %cst_13 = arith.constant 9.99999974E-6 : f32
    %28 = vector.broadcast %cst_13 : f32 to vector<2x1x128xf32>
    %29 = arith.addf %25, %28 : vector<2x1x128xf32>
    %30 = math.rsqrt %29 : vector<2x1x128xf32>
    %31 = vector.broadcast %30 : vector<2x1x128xf32> to vector<2x64x128xf32>
    %32 = arith.mulf %27, %31 : vector<2x64x128xf32>
    %33 = vector.shape_cast %32 : vector<2x64x128xf32> to vector<128x128xf32>
    %34 = arith.truncf %33 : vector<128x128xf32> to vector<128x128xbf16>
    %c1 = arith.constant 1 : index
    %c0_14 = arith.constant 0 : index
    %c0_15 = arith.constant 0 : index
    %35 = vector.load %arg3[%c1, %c0_14, %c0_15] : memref<11x128x128xbf16, #tpu.memory_space<vmem>>, vector<1x128x128xbf16>
    %36 = vector.shape_cast %35 : vector<1x128x128xbf16> to vector<128x128xbf16>
    %cst_16 = arith.constant dense<0.000000e+00> : vector<128x128xf32>
    %37 = tpu.matmul %34, %36, %cst_16 {dimension_numbers = #tpu.dot_dimension_numbers<[1], [0], [0], [1], [0, 0, 1, 1], [], []>} : vector<128x128xbf16>, vector<128x128xbf16>, vector<128x128xf32> -> vector<128x128xf32>
    %c1_17 = arith.constant 1 : index
    %c0_18 = arith.constant 0 : index
    %38 = vector.load %arg4[%c1_17, %c0_18] : memref<9x128xf32, #tpu.memory_space<vmem>>, vector<1x128xf32>
    %39 = vector.broadcast %38 : vector<1x128xf32> to vector<128x128xf32>
    %40 = arith.addf %37, %39 : vector<128x128xf32>
    %cst_19 = arith.constant 0.000000e+00 : f32
    %41 = vector.broadcast %cst_19 : f32 to vector<128x128xf32>
    %42 = arith.cmpf ogt, %40, %41 : vector<128x128xf32>
    %cst_20 = arith.constant 0.00999999977 : f32
    %43 = vector.broadcast %cst_20 : f32 to vector<128x128xf32>
    %44 = arith.mulf %43, %40 : vector<128x128xf32>
    %45 = arith.select %42, %40, %44 : vector<128x128xi1>, vector<128x128xf32>
    %46 = vector.shape_cast %45 : vector<128x128xf32> to vector<2x64x128xf32>
    %cst_21 = arith.constant dense<0.000000e+00> : vector<2x128xf32>
    %47 = vector.multi_reduction <add>, %46, %cst_21 [1] : vector<2x64x128xf32> to vector<2x128xf32>
    %48 = vector.shape_cast %47 : vector<2x128xf32> to vector<2x1x128xf32>
    %cst_22 = arith.constant 6.400000e+01 : f32
    %49 = vector.broadcast %cst_22 : f32 to vector<2x1x128xf32>
    %50 = arith.divf %48, %49 : vector<2x1x128xf32>
    %51 = arith.mulf %46, %46 : vector<2x64x128xf32>
    %cst_23 = arith.constant dense<0.000000e+00> : vector<2x128xf32>
    %52 = vector.multi_reduction <add>, %51, %cst_23 [1] : vector<2x64x128xf32> to vector<2x128xf32>
    %53 = vector.shape_cast %52 : vector<2x128xf32> to vector<2x1x128xf32>
    %cst_24 = arith.constant 6.400000e+01 : f32
    %54 = vector.broadcast %cst_24 : f32 to vector<2x1x128xf32>
    %55 = arith.divf %53, %54 : vector<2x1x128xf32>
    %56 = arith.mulf %50, %50 : vector<2x1x128xf32>
    %57 = arith.subf %55, %56 : vector<2x1x128xf32>
    %cst_25 = arith.constant 0.000000e+00 : f32
    %58 = vector.broadcast %cst_25 : f32 to vector<2x1x128xf32>
    %59 = arith.maximumf %57, %58 : vector<2x1x128xf32>
    %60 = vector.broadcast %50 : vector<2x1x128xf32> to vector<2x64x128xf32>
    %61 = arith.subf %46, %60 : vector<2x64x128xf32>
    %cst_26 = arith.constant 9.99999974E-6 : f32
    %62 = vector.broadcast %cst_26 : f32 to vector<2x1x128xf32>
    %63 = arith.addf %59, %62 : vector<2x1x128xf32>
    %64 = math.rsqrt %63 : vector<2x1x128xf32>
    %65 = vector.broadcast %64 : vector<2x1x128xf32> to vector<2x64x128xf32>
    %66 = arith.mulf %61, %65 : vector<2x64x128xf32>
    %67 = vector.shape_cast %66 : vector<2x64x128xf32> to vector<128x128xf32>
    %68 = arith.truncf %67 : vector<128x128xf32> to vector<128x128xbf16>
    %c2 = arith.constant 2 : index
    %c0_27 = arith.constant 0 : index
    %c0_28 = arith.constant 0 : index
    %69 = vector.load %arg3[%c2, %c0_27, %c0_28] : memref<11x128x128xbf16, #tpu.memory_space<vmem>>, vector<1x128x128xbf16>
    %70 = vector.shape_cast %69 : vector<1x128x128xbf16> to vector<128x128xbf16>
    %cst_29 = arith.constant dense<0.000000e+00> : vector<128x128xf32>
    %71 = tpu.matmul %68, %70, %cst_29 {dimension_numbers = #tpu.dot_dimension_numbers<[1], [0], [0], [1], [0, 0, 1, 1], [], []>} : vector<128x128xbf16>, vector<128x128xbf16>, vector<128x128xf32> -> vector<128x128xf32>
    %c2_30 = arith.constant 2 : index
    %c0_31 = arith.constant 0 : index
    %72 = vector.load %arg4[%c2_30, %c0_31] : memref<9x128xf32, #tpu.memory_space<vmem>>, vector<1x128xf32>
    %73 = vector.broadcast %72 : vector<1x128xf32> to vector<128x128xf32>
    %74 = arith.addf %71, %73 : vector<128x128xf32>
    %75 = vector.shape_cast %74 : vector<128x128xf32> to vector<2x64x128xf32>
    %cst_32 = arith.constant dense<0.000000e+00> : vector<2x128xf32>
    %76 = vector.multi_reduction <add>, %75, %cst_32 [1] : vector<2x64x128xf32> to vector<2x128xf32>
    %77 = vector.shape_cast %76 : vector<2x128xf32> to vector<2x1x128xf32>
    %cst_33 = arith.constant 6.400000e+01 : f32
    %78 = vector.broadcast %cst_33 : f32 to vector<2x1x128xf32>
    %79 = arith.divf %77, %78 : vector<2x1x128xf32>
    %80 = arith.mulf %75, %75 : vector<2x64x128xf32>
    %cst_34 = arith.constant dense<0.000000e+00> : vector<2x128xf32>
    %81 = vector.multi_reduction <add>, %80, %cst_34 [1] : vector<2x64x128xf32> to vector<2x128xf32>
    %82 = vector.shape_cast %81 : vector<2x128xf32> to vector<2x1x128xf32>
    %cst_35 = arith.constant 6.400000e+01 : f32
    %83 = vector.broadcast %cst_35 : f32 to vector<2x1x128xf32>
    %84 = arith.divf %82, %83 : vector<2x1x128xf32>
    %85 = arith.mulf %79, %79 : vector<2x1x128xf32>
    %86 = arith.subf %84, %85 : vector<2x1x128xf32>
    %cst_36 = arith.constant 0.000000e+00 : f32
    %87 = vector.broadcast %cst_36 : f32 to vector<2x1x128xf32>
    %88 = arith.maximumf %86, %87 : vector<2x1x128xf32>
    %89 = vector.broadcast %79 : vector<2x1x128xf32> to vector<2x64x128xf32>
    %90 = arith.subf %75, %89 : vector<2x64x128xf32>
    %cst_37 = arith.constant 9.99999974E-6 : f32
    %91 = vector.broadcast %cst_37 : f32 to vector<2x1x128xf32>
    %92 = arith.addf %88, %91 : vector<2x1x128xf32>
    %93 = math.rsqrt %92 : vector<2x1x128xf32>
    %94 = vector.broadcast %93 : vector<2x1x128xf32> to vector<2x64x128xf32>
    %95 = arith.mulf %90, %94 : vector<2x64x128xf32>
    %96 = vector.shape_cast %95 : vector<2x64x128xf32> to vector<128x128xf32>
    %97 = vector.extract_strided_slice %96 {offsets = [0, 0], sizes = [64, 128], strides = [1, 1]} : vector<128x128xf32> to vector<64x128xf32>
    %98 = vector.extract_strided_slice %96 {offsets = [64, 0], sizes = [64, 128], strides = [1, 1]} : vector<128x128xf32> to vector<64x128xf32>
    %c0_38 = arith.constant 0 : index
    %c0_39 = arith.constant 0 : index
    %99 = vector.load %arg5[%c0_38, %c0_39] : memref<64x128xf32, #tpu.memory_space<vmem>>, vector<64x128xf32>
    tpu.vector_store %arg5[%c0_38, %c0_39], %98 {strides = array<i32>} : memref<64x128xf32, #tpu.memory_space<vmem>>, vector<64x128xf32>,
    %100 = arith.truncf %97 : vector<64x128xf32> to vector<64x128xbf16>
    %101 = arith.truncf %98 : vector<64x128xf32> to vector<64x128xbf16>
    %c3 = arith.constant 3 : index
    %c0_40 = arith.constant 0 : index
    %c0_41 = arith.constant 0 : index
    %102 = vector.load %arg3[%c3, %c0_40, %c0_41] : memref<11x128x128xbf16, #tpu.memory_space<vmem>>, vector<1x128x128xbf16>
    %103 = vector.shape_cast %102 : vector<1x128x128xbf16> to vector<128x128xbf16>
    %cst_42 = arith.constant dense<0.000000e+00> : vector<64x128xf32>
    %104 = tpu.matmul %100, %103, %cst_42 {dimension_numbers = #tpu.dot_dimension_numbers<[1], [0], [0], [1], [0, 0, 1, 1], [], []>} : vector<64x128xbf16>, vector<128x128xbf16>, vector<64x128xf32> -> vector<64x128xf32>
    %c4 = arith.constant 4 : index
    %c0_43 = arith.constant 0 : index
    %c0_44 = arith.constant 0 : index
    %105 = vector.load %arg3[%c4, %c0_43, %c0_44] : memref<11x128x128xbf16, #tpu.memory_space<vmem>>, vector<1x128x128xbf16>
    %106 = vector.shape_cast %105 : vector<1x128x128xbf16> to vector<128x128xbf16>
    %cst_45 = arith.constant dense<0.000000e+00> : vector<64x128xf32>
    %107 = tpu.matmul %101, %106, %cst_45 {dimension_numbers = #tpu.dot_dimension_numbers<[1], [0], [0], [1], [0, 0, 1, 1], [], []>} : vector<64x128xbf16>, vector<128x128xbf16>, vector<64x128xf32> -> vector<64x128xf32>
    %108 = arith.addf %104, %107 : vector<64x128xf32>
    %c3_46 = arith.constant 3 : index
    %c0_47 = arith.constant 0 : index
    %109 = vector.load %arg4[%c3_46, %c0_47] : memref<9x128xf32, #tpu.memory_space<vmem>>, vector<1x128xf32>
    %110 = vector.broadcast %109 : vector<1x128xf32> to vector<64x128xf32>
    %111 = arith.addf %108, %110 : vector<64x128xf32>
    %cst_48 = arith.constant 0.000000e+00 : f32
    %112 = vector.broadcast %cst_48 : f32 to vector<64x128xf32>
    %113 = arith.maximumf %111, %112 : vector<64x128xf32>
    %114 = arith.truncf %113 : vector<64x128xf32> to vector<64x128xbf16>
    %c5 = arith.constant 5 : index
    %c0_49 = arith.constant 0 : index
    %c0_50 = arith.constant 0 : index
    %115 = vector.load %arg3[%c5, %c0_49, %c0_50] : memref<11x128x128xbf16, #tpu.memory_space<vmem>>, vector<1x128x128xbf16>
    %116 = vector.shape_cast %115 : vector<1x128x128xbf16> to vector<128x128xbf16>
    %cst_51 = arith.constant dense<0.000000e+00> : vector<64x128xf32>
    %117 = tpu.matmul %114, %116, %cst_51 {dimension_numbers = #tpu.dot_dimension_numbers<[1], [0], [0], [1], [0, 0, 1, 1], [], []>} : vector<64x128xbf16>, vector<128x128xbf16>, vector<64x128xf32> -> vector<64x128xf32>
    %c4_52 = arith.constant 4 : index
    %c0_53 = arith.constant 0 : index
    %118 = vector.load %arg4[%c4_52, %c0_53] : memref<9x128xf32, #tpu.memory_space<vmem>>, vector<1x128xf32>
    %119 = vector.broadcast %118 : vector<1x128xf32> to vector<64x128xf32>
    %120 = arith.addf %117, %119 : vector<64x128xf32>
    %cst_54 = arith.constant 0.000000e+00 : f32
    %121 = vector.broadcast %cst_54 : f32 to vector<64x128xf32>
    %122 = arith.maximumf %120, %121 : vector<64x128xf32>
    %123 = arith.truncf %122 : vector<64x128xf32> to vector<64x128xbf16>
    %c6 = arith.constant 6 : index
    %c0_55 = arith.constant 0 : index
    %c0_56 = arith.constant 0 : index
    %124 = vector.load %arg3[%c6, %c0_55, %c0_56] : memref<11x128x128xbf16, #tpu.memory_space<vmem>>, vector<1x128x128xbf16>
    %125 = vector.shape_cast %124 : vector<1x128x128xbf16> to vector<128x128xbf16>
    %cst_57 = arith.constant dense<0.000000e+00> : vector<64x128xf32>
    %126 = tpu.matmul %123, %125, %cst_57 {dimension_numbers = #tpu.dot_dimension_numbers<[1], [0], [0], [1], [0, 0, 1, 1], [], []>} : vector<64x128xbf16>, vector<128x128xbf16>, vector<64x128xf32> -> vector<64x128xf32>
    %c5_58 = arith.constant 5 : index
    %c0_59 = arith.constant 0 : index
    %127 = vector.load %arg4[%c5_58, %c0_59] : memref<9x128xf32, #tpu.memory_space<vmem>>, vector<1x128xf32>
    %128 = vector.broadcast %127 : vector<1x128xf32> to vector<64x128xf32>
    %129 = arith.addf %126, %128 : vector<64x128xf32>
    %c0_60 = arith.constant 0 : index
    %c0_61 = arith.constant 0 : index
    %130 = vector.load %arg7[%c0_60, %c0_61] : memref<64x128xf32, #tpu.memory_space<vmem>>, vector<64x128xf32>
    tpu.vector_store %arg7[%c0_60, %c0_61], %129 {strides = array<i32>} : memref<64x128xf32, #tpu.memory_space<vmem>>, vector<64x128xf32>,
    %c0_62 = arith.constant 0 : index
    %c0_63 = arith.constant 0 : index
    %131 = vector.load %arg2[%c0_62, %c0_63] : memref<64x128xbf16, #tpu.memory_space<vmem>>, vector<64x128xbf16>
    %c7 = arith.constant 7 : index
    %c0_64 = arith.constant 0 : index
    %c0_65 = arith.constant 0 : index
    %132 = vector.load %arg3[%c7, %c0_64, %c0_65] : memref<11x128x128xbf16, #tpu.memory_space<vmem>>, vector<1x128x128xbf16>
    %133 = vector.shape_cast %132 : vector<1x128x128xbf16> to vector<128x128xbf16>
    %cst_66 = arith.constant dense<0.000000e+00> : vector<64x128xf32>
    %134 = tpu.matmul %100, %133, %cst_66 {dimension_numbers = #tpu.dot_dimension_numbers<[1], [0], [0], [1], [0, 0, 1, 1], [], []>} : vector<64x128xbf16>, vector<128x128xbf16>, vector<64x128xf32> -> vector<64x128xf32>
    %c8 = arith.constant 8 : index
    %c0_67 = arith.constant 0 : index
    %c0_68 = arith.constant 0 : index
    %135 = vector.load %arg3[%c8, %c0_67, %c0_68] : memref<11x128x128xbf16, #tpu.memory_space<vmem>>, vector<1x128x128xbf16>
    %136 = vector.shape_cast %135 : vector<1x128x128xbf16> to vector<128x128xbf16>
    %cst_69 = arith.constant dense<0.000000e+00> : vector<64x128xf32>
    %137 = tpu.matmul %131, %136, %cst_69 {dimension_numbers = #tpu.dot_dimension_numbers<[1], [0], [0], [1], [0, 0, 1, 1], [], []>} : vector<64x128xbf16>, vector<128x128xbf16>, vector<64x128xf32> -> vector<64x128xf32>
    %138 = arith.addf %134, %137 : vector<64x128xf32>
    %c6_70 = arith.constant 6 : index
    %c0_71 = arith.constant 0 : index
    %139 = vector.load %arg4[%c6_70, %c0_71] : memref<9x128xf32, #tpu.memory_space<vmem>>, vector<1x128xf32>
    %140 = vector.broadcast %139 : vector<1x128xf32> to vector<64x128xf32>
    %141 = arith.addf %138, %140 : vector<64x128xf32>
    %cst_72 = arith.constant 0.000000e+00 : f32
    %142 = vector.broadcast %cst_72 : f32 to vector<64x128xf32>
    %143 = arith.cmpf ogt, %141, %142 : vector<64x128xf32>
    %cst_73 = arith.constant 0.00999999977 : f32
    %144 = vector.broadcast %cst_73 : f32 to vector<64x128xf32>
    %145 = arith.mulf %144, %141 : vector<64x128xf32>
    %146 = arith.select %143, %141, %145 : vector<64x128xi1>, vector<64x128xf32>
    %147 = arith.truncf %146 : vector<64x128xf32> to vector<64x128xbf16>
    %c9 = arith.constant 9 : index
    %c0_74 = arith.constant 0 : index
    %c0_75 = arith.constant 0 : index
    %148 = vector.load %arg3[%c9, %c0_74, %c0_75] : memref<11x128x128xbf16, #tpu.memory_space<vmem>>, vector<1x128x128xbf16>
    %149 = vector.shape_cast %148 : vector<1x128x128xbf16> to vector<128x128xbf16>
    %cst_76 = arith.constant dense<0.000000e+00> : vector<64x128xf32>
    %150 = tpu.matmul %147, %149, %cst_76 {dimension_numbers = #tpu.dot_dimension_numbers<[1], [0], [0], [1], [0, 0, 1, 1], [], []>} : vector<64x128xbf16>, vector<128x128xbf16>, vector<64x128xf32> -> vector<64x128xf32>
    %c7_77 = arith.constant 7 : index
    %c0_78 = arith.constant 0 : index
    %151 = vector.load %arg4[%c7_77, %c0_78] : memref<9x128xf32, #tpu.memory_space<vmem>>, vector<1x128xf32>
    %152 = vector.broadcast %151 : vector<1x128xf32> to vector<64x128xf32>
    %153 = arith.addf %150, %152 : vector<64x128xf32>
    %cst_79 = arith.constant 0.000000e+00 : f32
    %154 = vector.broadcast %cst_79 : f32 to vector<64x128xf32>
    %155 = arith.cmpf ogt, %153, %154 : vector<64x128xf32>
    %cst_80 = arith.constant 0.00999999977 : f32
    %156 = vector.broadcast %cst_80 : f32 to vector<64x128xf32>
    %157 = arith.mulf %156, %153 : vector<64x128xf32>
    %158 = arith.select %155, %153, %157 : vector<64x128xi1>, vector<64x128xf32>
    %159 = arith.truncf %158 : vector<64x128xf32> to vector<64x128xbf16>
    %c10 = arith.constant 10 : index
    %c0_81 = arith.constant 0 : index
    %c0_82 = arith.constant 0 : index
    %160 = vector.load %arg3[%c10, %c0_81, %c0_82] : memref<11x128x128xbf16, #tpu.memory_space<vmem>>, vector<1x128x128xbf16>
    %161 = vector.shape_cast %160 : vector<1x128x128xbf16> to vector<128x128xbf16>
    %cst_83 = arith.constant dense<0.000000e+00> : vector<64x128xf32>
    %162 = tpu.matmul %159, %161, %cst_83 {dimension_numbers = #tpu.dot_dimension_numbers<[1], [0], [0], [1], [0, 0, 1, 1], [], []>} : vector<64x128xbf16>, vector<128x128xbf16>, vector<64x128xf32> -> vector<64x128xf32>
    %c8_84 = arith.constant 8 : index
    %c0_85 = arith.constant 0 : index
    %163 = vector.load %arg4[%c8_84, %c0_85] : memref<9x128xf32, #tpu.memory_space<vmem>>, vector<1x128xf32>
    %164 = vector.broadcast %163 : vector<1x128xf32> to vector<64x128xf32>
    %165 = arith.addf %162, %164 : vector<64x128xf32>
    %c0_86 = arith.constant 0 : index
    %c0_87 = arith.constant 0 : index
    %166 = vector.load %arg6[%c0_86, %c0_87] : memref<64x128xf32, #tpu.memory_space<vmem>>, vector<64x128xf32>
    tpu.vector_store %arg6[%c0_86, %c0_87], %165 {strides = array<i32>} : memref<64x128xf32, #tpu.memory_space<vmem>>, vector<64x128xf32>,
    return
  }
  func.func @transform_0(%arg0: i32) -> (i32, i32) {
    %c0_i32 = arith.constant 0 : i32
    %c0_i32_0 = arith.constant 0 : i32
    %c0_i32_1 = arith.constant 0 : i32
    return %c0_i32, %c0_i32_0 : i32, i32
  }
  func.func @transform_1(%arg0: i32) -> (i32, i32) {
    %c0_i32 = arith.constant 0 : i32
    %c0_i32_0 = arith.constant 0 : i32
    %c0_i32_1 = arith.constant 0 : i32
    return %c0_i32, %c0_i32_0 : i32, i32
  }
  func.func @transform_2(%arg0: i32) -> (i32, i32, i32) {
    %c0_i32 = arith.constant 0 : i32
    %c0_i32_0 = arith.constant 0 : i32
    %c0_i32_1 = arith.constant 0 : i32
    %c0_i32_2 = arith.constant 0 : i32
    return %c0_i32, %c0_i32_0, %c0_i32_1 : i32, i32, i32
  }
  func.func @transform_3(%arg0: i32) -> (i32, i32) {
    %c0_i32 = arith.constant 0 : i32
    %c0_i32_0 = arith.constant 0 : i32
    %c0_i32_1 = arith.constant 0 : i32
    return %c0_i32, %c0_i32_0 : i32, i32
  }
  func.func @transform_4(%arg0: i32) -> (i32, i32) {
    %c0_i32 = arith.constant 0 : i32
    %c0_i32_0 = arith.constant 0 : i32
    %c0_i32_1 = arith.constant 0 : i32
    return %c0_i32, %c0_i32_0 : i32, i32
  }
  func.func @transform_5(%arg0: i32) -> (i32, i32) {
    %c0_i32 = arith.constant 0 : i32
    %c0_i32_0 = arith.constant 0 : i32
    %c0_i32_1 = arith.constant 0 : i32
    return %c0_i32, %c0_i32_0 : i32, i32
  }
  func.func @transform_6(%arg0: i32) -> (i32, i32) {
    %c0_i32 = arith.constant 0 : i32
    %c0_i32_0 = arith.constant 0 : i32
    %c0_i32_1 = arith.constant 0 : i32
    return %c0_i32, %c0_i32_0 : i32, i32
  }
}

</mosaic_0001>

<llo_original>
// kernel: tpu_custom_call.1
$region0: #{tpu_custom_call.1}
  #allocation0 [shape = 'u32[]', space=smem, size = 0x4, offset = 0x4, fixed_abs, tag = 'smem constant byte address 0x4 - core index']
  #allocation1 [shape = 'u32[72,128]{1,0:T(1,128)}', space=vmem, size = 0x9000, scoped, tag = 'internal scratch']
  %s0 = inlined_call_operand.hbm [shape: bf16[128,128], index: 0, kind: input, shape index: {}]
  %s1 = inlined_call_operand.hbm [shape: bf16[64,128], index: 1, kind: input, shape index: {}]
  %s2 = inlined_call_operand.hbm [shape: bf16[11,128,128], index: 2, kind: input, shape index: {}]
  %s3 = inlined_call_operand.hbm [shape: f32[9,128], index: 3, kind: input, shape index: {}]
  %s4 = inlined_call_operand.hbm [shape: f32[64,128], index: 4, kind: output, shape index: {0}]
  %s5 = inlined_call_operand.hbm [shape: f32[64,128], index: 5, kind: output, shape index: {1}]
  %s6 = inlined_call_operand.hbm [shape: f32[64,128], index: 6, kind: output, shape index: {2}]
  %7 = xla_tuple %s4, %s5, %s6
  %s8 = sld [smem:[#allocation0]]
  $region58: #{tpu_custom_call.1} parent=0
    _
  %s10 = ssub.s32 1, %s8
  %s11 = scalar_select 0, %s10, %s8
  $region1: #{tpu_custom_call.1} parent=0
    #allocation2 [shape = 'u8[32768]{0}', space=vmem, size = 0x8000, scoped, tag = 'input window, operand 0, single buffered']
    #allocation3 [shape = 's32[1]{0}', space=sflag, size = 0x4, scoped, tag = 'scoped memory for tpu_custom_call.1']
    #allocation4 [shape = 's32[1]{0}', space=sflag, size = 0x4, scoped, tag = 'scoped memory for tpu_custom_call.1']
    #allocation5 [shape = 'u8[16384]{0}', space=vmem, size = 0x4000, scoped, tag = 'input window, operand 1, single buffered']
    #allocation6 [shape = 's32[1]{0}', space=sflag, size = 0x4, scoped, tag = 'scoped memory for tpu_custom_call.1']
    #allocation7 [shape = 'u8[360448]{0}', space=vmem, size = 0x58000, scoped, tag = 'input window, operand 2, single buffered']
    #allocation8 [shape = 'u8[8192]{0}', space=vmem, size = 0x2000, scoped, tag = 'input window, operand 3, single buffered']
    #allocation9 [shape = 's32[1]{0}', space=sflag, size = 0x4, scoped, tag = 'scoped memory for tpu_custom_call.1']
    #allocation10 [shape = 'u8[32768]{0}', space=vmem, size = 0x8000, scoped, tag = 'output window, operand 0, single buffered']
    #allocation11 [shape = 'u8[32768]{0}', space=vmem, size = 0x8000, scoped, tag = 'output window, operand 1, single buffered']
    #allocation12 [shape = 's32[1]{0}', space=sflag, size = 0x4, scoped, tag = 'scoped memory for tpu_custom_call.1']
    #allocation13 [shape = 'u8[32768]{0}', space=vmem, size = 0x8000, scoped, tag = 'output window, operand 2, single buffered']
    %12 = vsyncpa [#allocation3], 0
    %13 = vsyncpa [#allocation6], 0
    %14 = vsyncpa [#allocation9], 0
    %15 = vsyncpa [#allocation4], 0
    %16 = vsyncpa [#allocation12], 0
    // Predicated region
    $region2: #{tpu_custom_call.1} parent=1 // pred_check
      _
    $region3: #{tpu_custom_call.1} parent=1 // pred_check_branch
      %18 = sbr.rel (0) target = $region5
    $region4: #{tpu_custom_call.1} parent=1 // pred_region
      %20 = vsyncadd [#allocation3], 0
      %s21 = sshll.u32 %s0, 4
      %s22 = int_to_ptr.hbm [resolvable:$true] %s21
      %s23 = sshll.u32 [#allocation2], 4
      %s24 = int_to_ptr.vmem [resolvable:$true] %s23
      %29 = dma.hbm_to_vmem [thread:$0]  %s22, 1024, %s24, [#allocation3], 64, 64, 4
    $region5: #{tpu_custom_call.1} parent=1 // pred_fallthru
      _
    // Predicated region
    $region6: #{tpu_custom_call.1} parent=1 // pred_check
      _
    $region7: #{tpu_custom_call.1} parent=1 // pred_check_branch
      %31 = sbr.rel (0) target = $region9
    $region8: #{tpu_custom_call.1} parent=1 // pred_region
      %33 = vsyncadd [#allocation6], 0
      %s34 = sshll.u32 %s1, 4
      %s35 = int_to_ptr.hbm [resolvable:$true] %s34
      %s36 = sshll.u32 [#allocation5], 4
      %s37 = int_to_ptr.vmem [resolvable:$true] %s36
      %42 = dma.hbm_to_vmem [thread:$0]  %s35, 512, %s37, [#allocation6], 64, 64, 4
    $region9: #{tpu_custom_call.1} parent=1 // pred_fallthru
      _
    // Predicated region
    $region10: #{tpu_custom_call.1} parent=1 // pred_check
      _
    $region11: #{tpu_custom_call.1} parent=1 // pred_check_branch
      %44 = sbr.rel (0) target = $region13
    $region12: #{tpu_custom_call.1} parent=1 // pred_region
      %46 = vsyncadd [#allocation6], 0
      %s47 = sshll.u32 %s2, 4
      %s48 = int_to_ptr.hbm [resolvable:$true] %s47
      %s49 = sshll.u32 [#allocation7], 4
      %s50 = int_to_ptr.vmem [resolvable:$true] %s49
      %55 = dma.hbm_to_vmem [thread:$0]  %s48, 11264, %s50, [#allocation6], 64, 64, 4
    $region13: #{tpu_custom_call.1} parent=1 // pred_fallthru
      _
    // Predicated region
    $region14: #{tpu_custom_call.1} parent=1 // pred_check
      _
    $region15: #{tpu_custom_call.1} parent=1 // pred_check_branch
      %57 = sbr.rel (0) target = $region17
    $region16: #{tpu_custom_call.1} parent=1 // pred_region
      %59 = vsyncadd [#allocation9], 0
      %s60 = sshll.u32 %s3, 4
      %s61 = int_to_ptr.hbm [resolvable:$true] %s60
      %s62 = sshll.u32 [#allocation8], 4
      %s63 = int_to_ptr.vmem [resolvable:$true] %s62
      %68 = dma.hbm_to_vmem [thread:$0]  %s61, 256, %s63, [#allocation9], 128, 128, 8
    $region17: #{tpu_custom_call.1} parent=1 // pred_fallthru
      _
    // Predicated region
    $region18: #{tpu_custom_call.1} parent=1 // pred_check
      _
    $region19: #{tpu_custom_call.1} parent=1 // pred_check_branch
      %70 = sbr.rel (0) target = $region21
    $region20: #{tpu_custom_call.1} parent=1 // pred_region
      %72 = dma.done [#allocation3], 1024
    $region21: #{tpu_custom_call.1} parent=1 // pred_fallthru
      _
    // Predicated region
    $region22: #{tpu_custom_call.1} parent=1 // pred_check
      _
    $region23: #{tpu_custom_call.1} parent=1 // pred_check_branch
      %74 = sbr.rel (0) target = $region25
    $region24: #{tpu_custom_call.1} parent=1 // pred_region
      %76 = dma.done [#allocation6], 512
    $region25: #{tpu_custom_call.1} parent=1 // pred_fallthru
      _
    // Predicated region
    $region26: #{tpu_custom_call.1} parent=1 // pred_check
      _
    $region27: #{tpu_custom_call.1} parent=1 // pred_check_branch
      %78 = sbr.rel (0) target = $region29
    $region28: #{tpu_custom_call.1} parent=1 // pred_region
      %80 = dma.done [#allocation6], 11264
    $region29: #{tpu_custom_call.1} parent=1 // pred_fallthru
      _
    // Predicated region
    $region30: #{tpu_custom_call.1} parent=1 // pred_check
      _
    $region31: #{tpu_custom_call.1} parent=1 // pred_check_branch
      %82 = sbr.rel (0) target = $region33
    $region32: #{tpu_custom_call.1} parent=1 // pred_region
      %84 = dma.done [#allocation9], 256
    $region33: #{tpu_custom_call.1} parent=1 // pred_fallthru
      _
    %v85 = vld [vmem:[#allocation2] sm:$0xf]
    %v86 = vld [vmem:[#allocation2 + $0x4] sm:$0xf]
    %v87 = vld [vmem:[#allocation2 + $0x8] sm:$0xf]
    %v88 = vld [vmem:[#allocation2 + $0xc] sm:$0xf]
    %v89 = vld [vmem:[#allocation2 + $0x10] sm:$0xf]
    %v90 = vld [vmem:[#allocation2 + $0x14] sm:$0xf]
    %v91 = vld [vmem:[#allocation2 + $0x18] sm:$0xf]
    %v92 = vld [vmem:[#allocation2 + $0x1c] sm:$0xf]
    %v93 = vld [vmem:[#allocation2 + $0x20] sm:$0xf]
    %v94 = vld [vmem:[#allocation2 + $0x24] sm:$0xf]
    %v95 = vld [vmem:[#allocation2 + $0x28] sm:$0xf]
    %v96 = vld [vmem:[#allocation2 + $0x2c] sm:$0xf]
    %v97 = vld [vmem:[#allocation2 + $0x30] sm:$0xf]
    %v98 = vld [vmem:[#allocation2 + $0x34] sm:$0xf]
    %v99 = vld [vmem:[#allocation2 + $0x38] sm:$0xf]
    %v100 = vld [vmem:[#allocation2 + $0x3c] sm:$0xf]
    %v101 = vld [vmem:[#allocation7] sm:$0xf]
    %v102 = vld [vmem:[#allocation7 + $0x4] sm:$0xf]
    %v103 = vld [vmem:[#allocation7 + $0x8] sm:$0xf]
    %v104 = vld [vmem:[#allocation7 + $0xc] sm:$0xf]
    %v105 = vld [vmem:[#allocation7 + $0x10] sm:$0xf]
    %v106 = vld [vmem:[#allocation7 + $0x14] sm:$0xf]
    %v107 = vld [vmem:[#allocation7 + $0x18] sm:$0xf]
    %v108 = vld [vmem:[#allocation7 + $0x1c] sm:$0xf]
    %v109 = vld [vmem:[#allocation7 + $0x20] sm:$0xf]
    %v110 = vld [vmem:[#allocation7 + $0x24] sm:$0xf]
    %v111 = vld [vmem:[#allocation7 + $0x28] sm:$0xf]
    %v112 = vld [vmem:[#allocation7 + $0x2c] sm:$0xf]
    %v113 = vld [vmem:[#allocation7 + $0x30] sm:$0xf]
    %v114 = vld [vmem:[#allocation7 + $0x34] sm:$0xf]
    %v115 = vld [vmem:[#allocation7 + $0x38] sm:$0xf]
    %v116 = vld [vmem:[#allocation7 + $0x3c] sm:$0xf]
    %v117 = vld [vmem:[#allocation8] sm:$0x1]
    %v118 = vperm.slane %v117, 0
    %v135 = vunpack.c.l.b16 %v85
    %v136 = vunpack.c.l.b16 %v86
    %v137 = vunpack.c.l.b16 %v87
    %v138 = vunpack.c.l.b16 %v88
    %v139 = vunpack.c.l.b16 %v89
    %v140 = vunpack.c.l.b16 %v90
    %v141 = vunpack.c.l.b16 %v91
    %v142 = vunpack.c.l.b16 %v92
    %v143 = vunpack.c.l.b16 %v93
    %v144 = vunpack.c.l.b16 %v94
    %v145 = vunpack.c.l.b16 %v95
    %v146 = vunpack.c.l.b16 %v96
    %v147 = vunpack.c.l.b16 %v97
    %v148 = vunpack.c.l.b16 %v98
    %v149 = vunpack.c.l.b16 %v99
    %v150 = vunpack.c.l.b16 %v100
    %v151 = vpack.c.b16 %v136, %v135
    %v152 = vpack.c.b16 %v138, %v137
    %v153 = vpack.c.b16 %v140, %v139
    %v154 = vpack.c.b16 %v142, %v141
    %v155 = vpack.c.b16 %v144, %v143
    %v156 = vpack.c.b16 %v146, %v145
    %v157 = vpack.c.b16 %v148, %v147
    %v158 = vpack.c.b16 %v150, %v149
    %v183 = vunpack.c.l.b16 %v101
    %v184 = vunpack.c.l.b16 %v102
    %v185 = vunpack.c.l.b16 %v103
    %v186 = vunpack.c.l.b16 %v104
    %v187 = vunpack.c.l.b16 %v105
    %v188 = vunpack.c.l.b16 %v106
    %v189 = vunpack.c.l.b16 %v107
    %v190 = vunpack.c.l.b16 %v108
    %v191 = vunpack.c.l.b16 %v109
    %v192 = vunpack.c.l.b16 %v110
    %v193 = vunpack.c.l.b16 %v111
    %v194 = vunpack.c.l.b16 %v112
    %v195 = vunpack.c.l.b16 %v113
    %v196 = vunpack.c.l.b16 %v114
    %v197 = vunpack.c.l.b16 %v115
    %v198 = vunpack.c.l.b16 %v116
    %v199 = vpack.c.b16 %v184, %v183
    %v200 = vpack.c.b16 %v186, %v185
    %v201 = vpack.c.b16 %v188, %v187
    %v202 = vpack.c.b16 %v190, %v189
    %v203 = vpack.c.b16 %v192, %v191
    %v204 = vpack.c.b16 %v194, %v193
    %v205 = vpack.c.b16 %v196, %v195
    %v206 = vpack.c.b16 %v198, %v197
    %215 = vmatpush.bf16.msra.mxu0 %v206
    %216 = vmatpush.bf16.msra.mxu0 %v205
    %217 = vmatpush.bf16.msra.mxu0 %v204
    %218 = vmatpush.bf16.msra.mxu0 %v203
    %219 = vmatpush.bf16.msra.mxu0 %v202
    %220 = vmatpush.bf16.msra.mxu0 %v201
    %221 = vmatpush.bf16.msra.mxu0 %v200
    %222 = vmatpush.bf16.msra.mxu0 %v199
    %223 = vmatmul.bf16.gmra.mxu0 %v151
    %v224 = vpop.f32.mrf.mxu0
    %v225 = vadd.f32 %v118, %v224
    %v226 = vpop.f32.mrf.mxu0
    %v227 = vadd.f32 %v118, %v226
    %228 = vmatmul.bf16.gmra.mxu0 %v152
    %v229 = vpop.f32.mrf.mxu0
    %v230 = vadd.f32 %v118, %v229
    %v231 = vpop.f32.mrf.mxu0
    %v232 = vadd.f32 %v118, %v231
    %233 = vmatmul.bf16.gmra.mxu0 %v153
    %v234 = vpop.f32.mrf.mxu0
    %v235 = vadd.f32 %v118, %v234
    %v236 = vpop.f32.mrf.mxu0
    %v237 = vadd.f32 %v118, %v236
    %238 = vmatmul.bf16.gmra.mxu0 %v154
    %v239 = vpop.f32.mrf.mxu0
    %v240 = vadd.f32 %v118, %v239
    %v241 = vpop.f32.mrf.mxu0
    %v242 = vadd.f32 %v118, %v241
    %243 = vmatmul.bf16.gmra.mxu0 %v155
    %v244 = vpop.f32.mrf.mxu0
    %v245 = vadd.f32 %v118, %v244
    %v246 = vpop.f32.mrf.mxu0
    %v247 = vadd.f32 %v118, %v246
    %248 = vmatmul.bf16.gmra.mxu0 %v156
    %v249 = vpop.f32.mrf.mxu0
    %v250 = vadd.f32 %v118, %v249
    %v251 = vpop.f32.mrf.mxu0
    %v252 = vadd.f32 %v118, %v251
    %253 = vmatmul.bf16.gmra.mxu0 %v157
    %v254 = vpop.f32.mrf.mxu0
    %v255 = vadd.f32 %v118, %v254
    %v256 = vpop.f32.mrf.mxu0
    %v257 = vadd.f32 %v118, %v256
    %258 = vmatmul.bf16.gmra.mxu0 %v158
    %v259 = vpop.f32.mrf.mxu0
    %v260 = vadd.f32 %v118, %v259
    %v261 = vpop.f32.mrf.mxu0
    %v262 = vadd.f32 %v118, %v261
    %263 = vdwg.mxu0
    %vm264 = vcmp.gt.f32.partialorder %v225, 0.0
    %vm265 = vcmp.gt.f32.partialorder %v227, 0.0
    %vm266 = vcmp.gt.f32.partialorder %v230, 0.0
    %vm267 = vcmp.gt.f32.partialorder %v232, 0.0
    %vm268 = vcmp.gt.f32.partialorder %v235, 0.0
    %vm269 = vcmp.gt.f32.partialorder %v237, 0.0
    %vm270 = vcmp.gt.f32.partialorder %v240, 0.0
    %vm271 = vcmp.gt.f32.partialorder %v242, 0.0
    %vm272 = vcmp.gt.f32.partialorder %v245, 0.0
    %vm273 = vcmp.gt.f32.partialorder %v247, 0.0
    %vm274 = vcmp.gt.f32.partialorder %v250, 0.0
    %vm275 = vcmp.gt.f32.partialorder %v252, 0.0
    %vm276 = vcmp.gt.f32.partialorder %v255, 0.0
    %vm277 = vcmp.gt.f32.partialorder %v257, 0.0
    %vm278 = vcmp.gt.f32.partialorder %v260, 0.0
    %vm279 = vcmp.gt.f32.partialorder %v262, 0.0
    %v280 = vmul.f32 %v225, 0.01
    %v281 = vmul.f32 %v227, 0.01
    %v282 = vmul.f32 %v230, 0.01
    %v283 = vmul.f32 %v232, 0.01
    %v284 = vmul.f32 %v235, 0.01
    %v285 = vmul.f32 %v237, 0.01
    %v286 = vmul.f32 %v240, 0.01
    %v287 = vmul.f32 %v242, 0.01
    %v288 = vmul.f32 %v245, 0.01
    %v289 = vmul.f32 %v247, 0.01
    %v290 = vmul.f32 %v250, 0.01
    %v291 = vmul.f32 %v252, 0.01
    %v292 = vmul.f32 %v255, 0.01
    %v293 = vmul.f32 %v257, 0.01
    %v294 = vmul.f32 %v260, 0.01
    %v295 = vmul.f32 %v262, 0.01
    %v296 = vsel %vm264, %v225, %v280
    %v297 = vsel %vm265, %v227, %v281
    %v298 = vsel %vm266, %v230, %v282
    %v299 = vsel %vm267, %v232, %v283
    %v300 = vsel %vm268, %v235, %v284
    %v301 = vsel %vm269, %v237, %v285
    %v302 = vsel %vm270, %v240, %v286
    %v303 = vsel %vm271, %v242, %v287
    %v304 = vsel %vm272, %v245, %v288
    %v305 = vsel %vm273, %v247, %v289
    %v306 = vsel %vm274, %v250, %v290
    %v307 = vsel %vm275, %v252, %v291
    %v308 = vsel %vm276, %v255, %v292
    %v309 = vsel %vm277, %v257, %v293
    %v310 = vsel %vm278, %v260, %v294
    %v311 = vsel %vm279, %v262, %v295
    %v312 = vadd.f32 %v296, %v297
    %v313 = vadd.f32 %v312, %v298
    %v314 = vadd.f32 %v313, %v299
    %v315 = vadd.f32 %v314, %v300
    %v316 = vadd.f32 %v315, %v301
    %v317 = vadd.f32 %v316, %v302
    %v318 = vadd.f32 %v317, %v303
    %v319 = vrot.slane %v318, 4
    %v320 = vadd.f32 %v318, %v319
    %v321 = vrot.slane %v320, 2
    %v322 = vadd.f32 %v320, %v321
    %v323 = vrot.slane %v322, 1
    %v324 = vadd.f32 %v322, %v323
    %v325 = vadd.f32 %v304, %v305
    %v326 = vadd.f32 %v325, %v306
    %v327 = vadd.f32 %v326, %v307
    %v328 = vadd.f32 %v327, %v308
    %v329 = vadd.f32 %v328, %v309
    %v330 = vadd.f32 %v329, %v310
    %v331 = vadd.f32 %v330, %v311
    %v332 = vrot.slane %v331, 4
    %v333 = vadd.f32 %v331, %v332
    %v334 = vrot.slane %v333, 2
    %v335 = vadd.f32 %v333, %v334
    %v336 = vrot.slane %v335, 1
    %v337 = vadd.f32 %v335, %v336
    %v338 = vrcp.pop 64.0
    %v339 = vmul.f32 64.0, %v338
    %v340 = vsub.f32 1.0, %v339
    %v341 = vmul.f32 %v338, %v340
    %v342 = vadd.f32 %v338, %v341
    %vm343 = vweird.f32 %v338
    %v344 = vsel %vm343, %v338, %v342
    %v345 = vmul.f32 %v324, %v344
    %v346 = vmul.f32 %v337, %v344
    %v347 = vmul.f32 %v296, %v296
    %v348 = vmul.f32 %v297, %v297
    %v349 = vmul.f32 %v298, %v298
    %v350 = vmul.f32 %v299, %v299
    %v351 = vmul.f32 %v300, %v300
    %v352 = vmul.f32 %v301, %v301
    %v353 = vmul.f32 %v302, %v302
    %v354 = vmul.f32 %v303, %v303
    %v355 = vmul.f32 %v304, %v304
    %v356 = vmul.f32 %v305, %v305
    %v357 = vmul.f32 %v306, %v306
    %v358 = vmul.f32 %v307, %v307
    %v359 = vmul.f32 %v308, %v308
    %v360 = vmul.f32 %v309, %v309
    %v361 = vmul.f32 %v310, %v310
    %v362 = vmul.f32 %v311, %v311
    %v363 = vadd.f32 %v347, %v348
    %v364 = vadd.f32 %v363, %v349
    %v365 = vadd.f32 %v364, %v350
    %v366 = vadd.f32 %v365, %v351
    %v367 = vadd.f32 %v366, %v352
    %v368 = vadd.f32 %v367, %v353
    %v369 = vadd.f32 %v368, %v354
    %v370 = vrot.slane %v369, 4
    %v371 = vadd.f32 %v369, %v370
    %v372 = vrot.slane %v371, 2
    %v373 = vadd.f32 %v371, %v372
    %v374 = vrot.slane %v373, 1
    %v375 = vadd.f32 %v373, %v374
    %v376 = vadd.f32 %v355, %v356
    %v377 = vadd.f32 %v376, %v357
    %v378 = vadd.f32 %v377, %v358
    %v379 = vadd.f32 %v378, %v359
    %v380 = vadd.f32 %v379, %v360
    %v381 = vadd.f32 %v380, %v361
    %v382 = vadd.f32 %v381, %v362
    %v383 = vrot.slane %v382, 4
    %v384 = vadd.f32 %v382, %v383
    %v385 = vrot.slane %v384, 2
    %v386 = vadd.f32 %v384, %v385
    %v387 = vrot.slane %v386, 1
    %v388 = vadd.f32 %v386, %v387
    %v389 = vmul.f32 %v375, %v344
    %v390 = vmul.f32 %v388, %v344
    %v391 = vmul.f32 %v345, %v345
    %v392 = vmul.f32 %v346, %v346
    %v393 = vsub.f32 %v389, %v391
    %v394 = vsub.f32 %v390, %v392
    %v395 = vmax.f32 %v393, 0.0
    %v396 = vmax.f32 %v394, 0.0
    %v397 = vsub.f32 %v296, %v345
    %v398 = vsub.f32 %v297, %v345
    %v399 = vsub.f32 %v298, %v345
    %v400 = vsub.f32 %v299, %v345
    %v401 = vsub.f32 %v300, %v345
    %v402 = vsub.f32 %v301, %v345
    %v403 = vsub.f32 %v302, %v345
    %v404 = vsub.f32 %v303, %v345
    %v405 = vsub.f32 %v304, %v346
    %v406 = vsub.f32 %v305, %v346
    %v407 = vsub.f32 %v306, %v346
    %v408 = vsub.f32 %v307, %v346
    %v409 = vsub.f32 %v308, %v346
    %v410 = vsub.f32 %v309, %v346
    %v411 = vsub.f32 %v310, %v346
    %v412 = vsub.f32 %v311, %v346
    %v413 = vadd.f32 %v395, 1e-05
    %v414 = vadd.f32 %v396, 1e-05
    %v415 = vrsqrt.pop %v413
    %v416 = vmul.f32 %v415, %v413
    %v417 = vmul.f32 %v416, %v415
    %v418 = vmul.f32 0.5, %v417
    %v419 = vsub.f32 1.5, %v418
    %v420 = vmul.f32 %v415, %v419
    %vm421 = vweird.f32 %v413
    %vm422 = vweird.f32 %v415
    %vm423 = vmor %vm421, %vm422
    %v424 = vsel %vm423, %v415, %v420
    %v425 = vrsqrt.pop %v414
    %v426 = vmul.f32 %v425, %v414
    %v427 = vmul.f32 %v426, %v425
    %v428 = vmul.f32 0.5, %v427
    %v429 = vsub.f32 1.5, %v428
    %v430 = vmul.f32 %v425, %v429
    %vm431 = vweird.f32 %v414
    %vm432 = vweird.f32 %v425
    %vm433 = vmor %vm431, %vm432
    %v434 = vsel %vm433, %v425, %v430
    %v435 = vmul.f32 %v397, %v424
    %v436 = vmul.f32 %v398, %v424
    %v437 = vmul.f32 %v399, %v424
    %v438 = vmul.f32 %v400, %v424
    %v439 = vmul.f32 %v401, %v424
    %v440 = vmul.f32 %v402, %v424
    %v441 = vmul.f32 %v403, %v424
    %v442 = vmul.f32 %v404, %v424
    %v443 = vmul.f32 %v405, %v434
    %v444 = vmul.f32 %v406, %v434
    %v445 = vmul.f32 %v407, %v434
    %v446 = vmul.f32 %v408, %v434
    %v447 = vmul.f32 %v409, %v434
    %v448 = vmul.f32 %v410, %v434
    %v449 = vmul.f32 %v411, %v434
    %v450 = vmul.f32 %v412, %v434
    %v451 = vpack.c.bf16 %v436, %v435
    %v452 = vpack.c.bf16 %v438, %v437
    %v453 = vpack.c.bf16 %v440, %v439
    %v454 = vpack.c.bf16 %v442, %v441
    %v455 = vpack.c.bf16 %v444, %v443
    %v456 = vpack.c.bf16 %v446, %v445
    %v457 = vpack.c.bf16 %v448, %v447
    %v458 = vpack.c.bf16 %v450, %v449
    %s459 = scalar_lea.vmem [#allocation7], 64
    %v460 = vld [vmem:[%s459] sm:$0xf]
    %v461 = vld [vmem:[%s459 + $0x4] sm:$0xf]
    %v462 = vld [vmem:[%s459 + $0x8] sm:$0xf]
    %v463 = vld [vmem:[%s459 + $0xc] sm:$0xf]
    %v464 = vld [vmem:[%s459 + $0x10] sm:$0xf]
    %v465 = vld [vmem:[%s459 + $0x14] sm:$0xf]
    %v466 = vld [vmem:[%s459 + $0x18] sm:$0xf]
    %v467 = vld [vmem:[%s459 + $0x1c] sm:$0xf]
    %v468 = vld [vmem:[%s459 + $0x20] sm:$0xf]
    %v469 = vld [vmem:[%s459 + $0x24] sm:$0xf]
    %v470 = vld [vmem:[%s459 + $0x28] sm:$0xf]
    %v471 = vld [vmem:[%s459 + $0x2c] sm:$0xf]
    %v472 = vld [vmem:[%s459 + $0x30] sm:$0xf]
    %v473 = vld [vmem:[%s459 + $0x34] sm:$0xf]
    %v474 = vld [vmem:[%s459 + $0x38] sm:$0xf]
    %v475 = vld [vmem:[%s459 + $0x3c] sm:$0xf]
    %v476 = vld [vmem:[#allocation8 + $0x1] sm:$0x1]
    %v477 = vperm.slane %v476, 0
    %v494 = vunpack.c.l.b16 %v460
    %v495 = vunpack.c.l.b16 %v461
    %v496 = vunpack.c.l.b16 %v462
    %v497 = vunpack.c.l.b16 %v463
    %v498 = vunpack.c.l.b16 %v464
    %v499 = vunpack.c.l.b16 %v465
    %v500 = vunpack.c.l.b16 %v466
    %v501 = vunpack.c.l.b16 %v467
    %v502 = vunpack.c.l.b16 %v468
    %v503 = vunpack.c.l.b16 %v469
    %v504 = vunpack.c.l.b16 %v470
    %v505 = vunpack.c.l.b16 %v471
    %v506 = vunpack.c.l.b16 %v472
    %v507 = vunpack.c.l.b16 %v473
    %v508 = vunpack.c.l.b16 %v474
    %v509 = vunpack.c.l.b16 %v475
    %v510 = vpack.c.b16 %v495, %v494
    %v511 = vpack.c.b16 %v497, %v496
    %v512 = vpack.c.b16 %v499, %v498
    %v513 = vpack.c.b16 %v501, %v500
    %v514 = vpack.c.b16 %v503, %v502
    %v515 = vpack.c.b16 %v505, %v504
    %v516 = vpack.c.b16 %v507, %v506
    %v517 = vpack.c.b16 %v509, %v508
    %526 = vmatpush.bf16.msra.mxu0 %v517
    %527 = vmatpush.bf16.msra.mxu0 %v516
    %528 = vmatpush.bf16.msra.mxu0 %v515
    %529 = vmatpush.bf16.msra.mxu0 %v514
    %530 = vmatpush.bf16.msra.mxu0 %v513
    %531 = vmatpush.bf16.msra.mxu0 %v512
    %532 = vmatpush.bf16.msra.mxu0 %v511
    %533 = vmatpush.bf16.msra.mxu0 %v510
    %534 = vmatmul.bf16.gmra.mxu0 %v451
    %v535 = vpop.f32.mrf.mxu0
    %v536 = vadd.f32 %v477, %v535
    %v537 = vpop.f32.mrf.mxu0
    %v538 = vadd.f32 %v477, %v537
    %539 = vmatmul.bf16.gmra.mxu0 %v452
    %v540 = vpop.f32.mrf.mxu0
    %v541 = vadd.f32 %v477, %v540
    %v542 = vpop.f32.mrf.mxu0
    %v543 = vadd.f32 %v477, %v542
    %544 = vmatmul.bf16.gmra.mxu0 %v453
    %v545 = vpop.f32.mrf.mxu0
    %v546 = vadd.f32 %v477, %v545
    %v547 = vpop.f32.mrf.mxu0
    %v548 = vadd.f32 %v477, %v547
    %549 = vmatmul.bf16.gmra.mxu0 %v454
    %v550 = vpop.f32.mrf.mxu0
    %v551 = vadd.f32 %v477, %v550
    %v552 = vpop.f32.mrf.mxu0
    %v553 = vadd.f32 %v477, %v552
    %554 = vmatmul.bf16.gmra.mxu0 %v455
    %v555 = vpop.f32.mrf.mxu0
    %v556 = vadd.f32 %v477, %v555
    %v557 = vpop.f32.mrf.mxu0
    %v558 = vadd.f32 %v477, %v557
    %559 = vmatmul.bf16.gmra.mxu0 %v456
    %v560 = vpop.f32.mrf.mxu0
    %v561 = vadd.f32 %v477, %v560
    %v562 = vpop.f32.mrf.mxu0
    %v563 = vadd.f32 %v477, %v562
    %564 = vmatmul.bf16.gmra.mxu0 %v457
    %v565 = vpop.f32.mrf.mxu0
    %v566 = vadd.f32 %v477, %v565
    %v567 = vpop.f32.mrf.mxu0
    %v568 = vadd.f32 %v477, %v567
    %569 = vmatmul.bf16.gmra.mxu0 %v458
    %v570 = vpop.f32.mrf.mxu0
    %v571 = vadd.f32 %v477, %v570
    %v572 = vpop.f32.mrf.mxu0
    %v573 = vadd.f32 %v477, %v572
    %574 = vdwg.mxu0
    %vm575 = vcmp.gt.f32.partialorder %v536, 0.0
    %vm576 = vcmp.gt.f32.partialorder %v538, 0.0
    %vm577 = vcmp.gt.f32.partialorder %v541, 0.0
    %vm578 = vcmp.gt.f32.partialorder %v543, 0.0
    %vm579 = vcmp.gt.f32.partialorder %v546, 0.0
    %vm580 = vcmp.gt.f32.partialorder %v548, 0.0
    %vm581 = vcmp.gt.f32.partialorder %v551, 0.0
    %vm582 = vcmp.gt.f32.partialorder %v553, 0.0
    %vm583 = vcmp.gt.f32.partialorder %v556, 0.0
    %vm584 = vcmp.gt.f32.partialorder %v558, 0.0
    %vm585 = vcmp.gt.f32.partialorder %v561, 0.0
    %vm586 = vcmp.gt.f32.partialorder %v563, 0.0
    %vm587 = vcmp.gt.f32.partialorder %v566, 0.0
    %vm588 = vcmp.gt.f32.partialorder %v568, 0.0
    %vm589 = vcmp.gt.f32.partialorder %v571, 0.0
    %vm590 = vcmp.gt.f32.partialorder %v573, 0.0
    %v591 = vmul.f32 %v536, 0.01
    %v592 = vmul.f32 %v538, 0.01
    %v593 = vmul.f32 %v541, 0.01
    %v594 = vmul.f32 %v543, 0.01
    %v595 = vmul.f32 %v546, 0.01
    %v596 = vmul.f32 %v548, 0.01
    %v597 = vmul.f32 %v551, 0.01
    %v598 = vmul.f32 %v553, 0.01
    %v599 = vmul.f32 %v556, 0.01
    %v600 = vmul.f32 %v558, 0.01
    %v601 = vmul.f32 %v561, 0.01
    %v602 = vmul.f32 %v563, 0.01
    %v603 = vmul.f32 %v566, 0.01
    %v604 = vmul.f32 %v568, 0.01
    %v605 = vmul.f32 %v571, 0.01
    %v606 = vmul.f32 %v573, 0.01
    %v607 = vsel %vm575, %v536, %v591
    %v608 = vsel %vm576, %v538, %v592
    %v609 = vsel %vm577, %v541, %v593
    %v610 = vsel %vm578, %v543, %v594
    %v611 = vsel %vm579, %v546, %v595
    %v612 = vsel %vm580, %v548, %v596
    %v613 = vsel %vm581, %v551, %v597
    %v614 = vsel %vm582, %v553, %v598
    %v615 = vsel %vm583, %v556, %v599
    %v616 = vsel %vm584, %v558, %v600
    %v617 = vsel %vm585, %v561, %v601
    %v618 = vsel %vm586, %v563, %v602
    %v619 = vsel %vm587, %v566, %v603
    %v620 = vsel %vm588, %v568, %v604
    %v621 = vsel %vm589, %v571, %v605
    %v622 = vsel %vm590, %v573, %v606
    %v623 = vadd.f32 %v607, %v608
    %v624 = vadd.f32 %v623, %v609
    %v625 = vadd.f32 %v624, %v610
    %v626 = vadd.f32 %v625, %v611
    %v627 = vadd.f32 %v626, %v612
    %v628 = vadd.f32 %v627, %v613
    %v629 = vadd.f32 %v628, %v614
    %v630 = vrot.slane %v629, 4
    %v631 = vadd.f32 %v629, %v630
    %v632 = vrot.slane %v631, 2
    %v633 = vadd.f32 %v631, %v632
    %v634 = vrot.slane %v633, 1
    %v635 = vadd.f32 %v633, %v634
    %v636 = vadd.f32 %v615, %v616
    %v637 = vadd.f32 %v636, %v617
    %v638 = vadd.f32 %v637, %v618
    %v639 = vadd.f32 %v638, %v619
    %v640 = vadd.f32 %v639, %v620
    %v641 = vadd.f32 %v640, %v621
    %v642 = vadd.f32 %v641, %v622
    %v643 = vrot.slane %v642, 4
    %v644 = vadd.f32 %v642, %v643
    %v645 = vrot.slane %v644, 2
    %v646 = vadd.f32 %v644, %v645
    %v647 = vrot.slane %v646, 1
    %v648 = vadd.f32 %v646, %v647
    %v649 = vmul.f32 %v635, %v344
    %v650 = vmul.f32 %v648, %v344
    %v651 = vmul.f32 %v607, %v607
    %v652 = vmul.f32 %v608, %v608
    %v653 = vmul.f32 %v609, %v609
    %v654 = vmul.f32 %v610, %v610
    %v655 = vmul.f32 %v611, %v611
    %v656 = vmul.f32 %v612, %v612
    %v657 = vmul.f32 %v613, %v613
    %v658 = vmul.f32 %v614, %v614
    %v659 = vmul.f32 %v615, %v615
    %v660 = vmul.f32 %v616, %v616
    %v661 = vmul.f32 %v617, %v617
    %v662 = vmul.f32 %v618, %v618
    %v663 = vmul.f32 %v619, %v619
    %v664 = vmul.f32 %v620, %v620
    %v665 = vmul.f32 %v621, %v621
    %v666 = vmul.f32 %v622, %v622
    %v667 = vadd.f32 %v651, %v652
    %v668 = vadd.f32 %v667, %v653
    %v669 = vadd.f32 %v668, %v654
    %v670 = vadd.f32 %v669, %v655
    %v671 = vadd.f32 %v670, %v656
    %v672 = vadd.f32 %v671, %v657
    %v673 = vadd.f32 %v672, %v658
    %v674 = vrot.slane %v673, 4
    %v675 = vadd.f32 %v673, %v674
    %v676 = vrot.slane %v675, 2
    %v677 = vadd.f32 %v675, %v676
    %v678 = vrot.slane %v677, 1
    %v679 = vadd.f32 %v677, %v678
    %v680 = vadd.f32 %v659, %v660
    %v681 = vadd.f32 %v680, %v661
    %v682 = vadd.f32 %v681, %v662
    %v683 = vadd.f32 %v682, %v663
    %v684 = vadd.f32 %v683, %v664
    %v685 = vadd.f32 %v684, %v665
    %v686 = vadd.f32 %v685, %v666
    %v687 = vrot.slane %v686, 4
    %v688 = vadd.f32 %v686, %v687
    %v689 = vrot.slane %v688, 2
    %v690 = vadd.f32 %v688, %v689
    %v691 = vrot.slane %v690, 1
    %v692 = vadd.f32 %v690, %v691
    %v693 = vmul.f32 %v679, %v344
    %v694 = vmul.f32 %v692, %v344
    %v695 = vmul.f32 %v649, %v649
    %v696 = vmul.f32 %v650, %v650
    %v697 = vsub.f32 %v693, %v695
    %v698 = vsub.f32 %v694, %v696
    %v699 = vmax.f32 %v697, 0.0
    %v700 = vmax.f32 %v698, 0.0
    %v701 = vsub.f32 %v607, %v649
    %v702 = vsub.f32 %v608, %v649
    %v703 = vsub.f32 %v609, %v649
    %v704 = vsub.f32 %v610, %v649
    %v705 = vsub.f32 %v611, %v649
    %v706 = vsub.f32 %v612, %v649
    %v707 = vsub.f32 %v613, %v649
    %v708 = vsub.f32 %v614, %v649
    %v709 = vsub.f32 %v615, %v650
    %v710 = vsub.f32 %v616, %v650
    %v711 = vsub.f32 %v617, %v650
    %v712 = vsub.f32 %v618, %v650
    %v713 = vsub.f32 %v619, %v650
    %v714 = vsub.f32 %v620, %v650
    %v715 = vsub.f32 %v621, %v650
    %v716 = vsub.f32 %v622, %v650
    %v717 = vadd.f32 %v699, 1e-05
    %v718 = vadd.f32 %v700, 1e-05
    %v719 = vrsqrt.pop %v717
    %v720 = vmul.f32 %v719, %v717
    %v721 = vmul.f32 %v720, %v719
    %v722 = vmul.f32 0.5, %v721
    %v723 = vsub.f32 1.5, %v722
    %v724 = vmul.f32 %v719, %v723
    %vm725 = vweird.f32 %v717
    %vm726 = vweird.f32 %v719
    %vm727 = vmor %vm725, %vm726
    %v728 = vsel %vm727, %v719, %v724
    %v729 = vrsqrt.pop %v718
    %v730 = vmul.f32 %v729, %v718
    %v731 = vmul.f32 %v730, %v729
    %v732 = vmul.f32 0.5, %v731
    %v733 = vsub.f32 1.5, %v732
    %v734 = vmul.f32 %v729, %v733
    %vm735 = vweird.f32 %v718
    %vm736 = vweird.f32 %v729
    %vm737 = vmor %vm735, %vm736
    %v738 = vsel %vm737, %v729, %v734
    %v739 = vmul.f32 %v701, %v728
    %v740 = vmul.f32 %v702, %v728
    %v741 = vmul.f32 %v703, %v728
    %v742 = vmul.f32 %v704, %v728
    %v743 = vmul.f32 %v705, %v728
    %v744 = vmul.f32 %v706, %v728
    %v745 = vmul.f32 %v707, %v728
    %v746 = vmul.f32 %v708, %v728
    %v747 = vmul.f32 %v709, %v738
    %v748 = vmul.f32 %v710, %v738
    %v749 = vmul.f32 %v711, %v738
    %v750 = vmul.f32 %v712, %v738
    %v751 = vmul.f32 %v713, %v738
    %v752 = vmul.f32 %v714, %v738
    %v753 = vmul.f32 %v715, %v738
    %v754 = vmul.f32 %v716, %v738
    %v755 = vpack.c.bf16 %v740, %v739
    %v756 = vpack.c.bf16 %v742, %v741
    %v757 = vpack.c.bf16 %v744, %v743
    %v758 = vpack.c.bf16 %v746, %v745
    %v759 = vpack.c.bf16 %v748, %v747
    %v760 = vpack.c.bf16 %v750, %v749
    %v761 = vpack.c.bf16 %v752, %v751
    %v762 = vpack.c.bf16 %v754, %v753
    %s763 = scalar_lea.vmem [#allocation7], 128
    %v764 = vld [vmem:[%s763] sm:$0xf]
    %v765 = vld [vmem:[%s763 + $0x4] sm:$0xf]
    %v766 = vld [vmem:[%s763 + $0x8] sm:$0xf]
    %v767 = vld [vmem:[%s763 + $0xc] sm:$0xf]
    %v768 = vld [vmem:[%s763 + $0x10] sm:$0xf]
    %v769 = vld [vmem:[%s763 + $0x14] sm:$0xf]
    %v770 = vld [vmem:[%s763 + $0x18] sm:$0xf]
    %v771 = vld [vmem:[%s763 + $0x1c] sm:$0xf]
    %v772 = vld [vmem:[%s763 + $0x20] sm:$0xf]
    %v773 = vld [vmem:[%s763 + $0x24] sm:$0xf]
    %v774 = vld [vmem:[%s763 + $0x28] sm:$0xf]
    %v775 = vld [vmem:[%s763 + $0x2c] sm:$0xf]
    %v776 = vld [vmem:[%s763 + $0x30] sm:$0xf]
    %v777 = vld [vmem:[%s763 + $0x34] sm:$0xf]
    %v778 = vld [vmem:[%s763 + $0x38] sm:$0xf]
    %v779 = vld [vmem:[%s763 + $0x3c] sm:$0xf]
    %v780 = vld [vmem:[#allocation8 + $0x2] sm:$0x1]
    %v781 = vperm.slane %v780, 0
    %v798 = vunpack.c.l.b16 %v764
    %v799 = vunpack.c.l.b16 %v765
    %v800 = vunpack.c.l.b16 %v766
    %v801 = vunpack.c.l.b16 %v767
    %v802 = vunpack.c.l.b16 %v768
    %v803 = vunpack.c.l.b16 %v769
    %v804 = vunpack.c.l.b16 %v770
    %v805 = vunpack.c.l.b16 %v771
    %v806 = vunpack.c.l.b16 %v772
    %v807 = vunpack.c.l.b16 %v773
    %v808 = vunpack.c.l.b16 %v774
    %v809 = vunpack.c.l.b16 %v775
    %v810 = vunpack.c.l.b16 %v776
    %v811 = vunpack.c.l.b16 %v777
    %v812 = vunpack.c.l.b16 %v778
    %v813 = vunpack.c.l.b16 %v779
    %v814 = vpack.c.b16 %v799, %v798
    %v815 = vpack.c.b16 %v801, %v800
    %v816 = vpack.c.b16 %v803, %v802
    %v817 = vpack.c.b16 %v805, %v804
    %v818 = vpack.c.b16 %v807, %v806
    %v819 = vpack.c.b16 %v809, %v808
    %v820 = vpack.c.b16 %v811, %v810
    %v821 = vpack.c.b16 %v813, %v812
    %830 = vmatpush.bf16.msra.mxu0 %v821
    %831 = vmatpush.bf16.msra.mxu0 %v820
    %832 = vmatpush.bf16.msra.mxu0 %v819
    %833 = vmatpush.bf16.msra.mxu0 %v818
    %834 = vmatpush.bf16.msra.mxu0 %v817
    %835 = vmatpush.bf16.msra.mxu0 %v816
    %836 = vmatpush.bf16.msra.mxu0 %v815
    %837 = vmatpush.bf16.msra.mxu0 %v814
    %838 = vmatmul.bf16.gmra.mxu0 %v755
    %v839 = vpop.f32.mrf.mxu0
    %v840 = vadd.f32 %v781, %v839
    %v841 = vpop.f32.mrf.mxu0
    %v842 = vadd.f32 %v781, %v841
    %843 = vmatmul.bf16.gmra.mxu0 %v756
    %v844 = vpop.f32.mrf.mxu0
    %v845 = vadd.f32 %v781, %v844
    %v846 = vpop.f32.mrf.mxu0
    %v847 = vadd.f32 %v781, %v846
    %848 = vmatmul.bf16.gmra.mxu0 %v757
    %v849 = vpop.f32.mrf.mxu0
    %v850 = vadd.f32 %v781, %v849
    %v851 = vpop.f32.mrf.mxu0
    %v852 = vadd.f32 %v781, %v851
    %853 = vmatmul.bf16.gmra.mxu0 %v758
    %v854 = vpop.f32.mrf.mxu0
    %v855 = vadd.f32 %v781, %v854
    %v856 = vpop.f32.mrf.mxu0
    %v857 = vadd.f32 %v781, %v856
    %858 = vmatmul.bf16.gmra.mxu0 %v759
    %v859 = vpop.f32.mrf.mxu0
    %v860 = vadd.f32 %v781, %v859
    %v861 = vpop.f32.mrf.mxu0
    %v862 = vadd.f32 %v781, %v861
    %863 = vmatmul.bf16.gmra.mxu0 %v760
    %v864 = vpop.f32.mrf.mxu0
    %v865 = vadd.f32 %v781, %v864
    %v866 = vpop.f32.mrf.mxu0
    %v867 = vadd.f32 %v781, %v866
    %868 = vmatmul.bf16.gmra.mxu0 %v761
    %v869 = vpop.f32.mrf.mxu0
    %v870 = vadd.f32 %v781, %v869
    %v871 = vpop.f32.mrf.mxu0
    %v872 = vadd.f32 %v781, %v871
    %873 = vmatmul.bf16.gmra.mxu0 %v762
    %v874 = vpop.f32.mrf.mxu0
    %v875 = vadd.f32 %v781, %v874
    %v876 = vpop.f32.mrf.mxu0
    %v877 = vadd.f32 %v781, %v876
    %878 = vdwg.mxu0
    %v879 = vadd.f32 %v840, %v842
    %v880 = vadd.f32 %v879, %v845
    %v881 = vadd.f32 %v880, %v847
    %v882 = vadd.f32 %v881, %v850
    %v883 = vadd.f32 %v882, %v852
    %v884 = vadd.f32 %v883, %v855
    %v885 = vadd.f32 %v884, %v857
    %v886 = vrot.slane %v885, 4
    %v887 = vadd.f32 %v885, %v886
    %v888 = vrot.slane %v887, 2
    %v889 = vadd.f32 %v887, %v888
    %v890 = vrot.slane %v889, 1
    %v891 = vadd.f32 %v889, %v890
    %v892 = vadd.f32 %v860, %v862
    %v893 = vadd.f32 %v892, %v865
    %v894 = vadd.f32 %v893, %v867
    %v895 = vadd.f32 %v894, %v870
    %v896 = vadd.f32 %v895, %v872
    %v897 = vadd.f32 %v896, %v875
    %v898 = vadd.f32 %v897, %v877
    %v899 = vrot.slane %v898, 4
    %v900 = vadd.f32 %v898, %v899
    %v901 = vrot.slane %v900, 2
    %v902 = vadd.f32 %v900, %v901
    %v903 = vrot.slane %v902, 1
    %v904 = vadd.f32 %v902, %v903
    %v905 = vmul.f32 %v891, %v344
    %v906 = vmul.f32 %v904, %v344
    %v907 = vmul.f32 %v840, %v840
    %v908 = vmul.f32 %v842, %v842
    %v909 = vmul.f32 %v845, %v845
    %v910 = vmul.f32 %v847, %v847
    %v911 = vmul.f32 %v850, %v850
    %v912 = vmul.f32 %v852, %v852
    %v913 = vmul.f32 %v855, %v855
    %v914 = vmul.f32 %v857, %v857
    %v915 = vmul.f32 %v860, %v860
    %v916 = vmul.f32 %v862, %v862
    %v917 = vmul.f32 %v865, %v865
    %v918 = vmul.f32 %v867, %v867
    %v919 = vmul.f32 %v870, %v870
    %v920 = vmul.f32 %v872, %v872
    %v921 = vmul.f32 %v875, %v875
    %v922 = vmul.f32 %v877, %v877
    %v923 = vadd.f32 %v907, %v908
    %v924 = vadd.f32 %v923, %v909
    %v925 = vadd.f32 %v924, %v910
    %v926 = vadd.f32 %v925, %v911
    %v927 = vadd.f32 %v926, %v912
    %v928 = vadd.f32 %v927, %v913
    %v929 = vadd.f32 %v928, %v914
    %v930 = vrot.slane %v929, 4
    %v931 = vadd.f32 %v929, %v930
    %v932 = vrot.slane %v931, 2
    %v933 = vadd.f32 %v931, %v932
    %v934 = vrot.slane %v933, 1
    %v935 = vadd.f32 %v933, %v934
    %v936 = vadd.f32 %v915, %v916
    %v937 = vadd.f32 %v936, %v917
    %v938 = vadd.f32 %v937, %v918
    %v939 = vadd.f32 %v938, %v919
    %v940 = vadd.f32 %v939, %v920
    %v941 = vadd.f32 %v940, %v921
    %v942 = vadd.f32 %v941, %v922
    %v943 = vrot.slane %v942, 4
    %v944 = vadd.f32 %v942, %v943
    %v945 = vrot.slane %v944, 2
    %v946 = vadd.f32 %v944, %v945
    %v947 = vrot.slane %v946, 1
    %v948 = vadd.f32 %v946, %v947
    %v949 = vmul.f32 %v935, %v344
    %v950 = vmul.f32 %v948, %v344
    %v951 = vmul.f32 %v905, %v905
    %v952 = vmul.f32 %v906, %v906
    %v953 = vsub.f32 %v949, %v951
    %v954 = vsub.f32 %v950, %v952
    %v955 = vmax.f32 %v953, 0.0
    %v956 = vmax.f32 %v954, 0.0
    %v957 = vsub.f32 %v840, %v905
    %v958 = vsub.f32 %v842, %v905
    %v959 = vsub.f32 %v845, %v905
    %v960 = vsub.f32 %v847, %v905
    %v961 = vsub.f32 %v850, %v905
    %v962 = vsub.f32 %v852, %v905
    %v963 = vsub.f32 %v855, %v905
    %v964 = vsub.f32 %v857, %v905
    %v965 = vsub.f32 %v860, %v906
    %v966 = vsub.f32 %v862, %v906
    %v967 = vsub.f32 %v865, %v906
    %v968 = vsub.f32 %v867, %v906
    %v969 = vsub.f32 %v870, %v906
    %v970 = vsub.f32 %v872, %v906
    %v971 = vsub.f32 %v875, %v906
    %v972 = vsub.f32 %v877, %v906
    %v973 = vadd.f32 %v955, 1e-05
    %v974 = vadd.f32 %v956, 1e-05
    %v975 = vrsqrt.pop %v973
    %v976 = vmul.f32 %v975, %v973
    %v977 = vmul.f32 %v976, %v975
    %v978 = vmul.f32 0.5, %v977
    %v979 = vsub.f32 1.5, %v978
    %v980 = vmul.f32 %v975, %v979
    %vm981 = vweird.f32 %v973
    %vm982 = vweird.f32 %v975
    %vm983 = vmor %vm981, %vm982
    %v984 = vsel %vm983, %v975, %v980
    %v985 = vrsqrt.pop %v974
    %v986 = vmul.f32 %v985, %v974
    %v987 = vmul.f32 %v986, %v985
    %v988 = vmul.f32 0.5, %v987
    %v989 = vsub.f32 1.5, %v988
    %v990 = vmul.f32 %v985, %v989
    %vm991 = vweird.f32 %v974
    %vm992 = vweird.f32 %v985
    %vm993 = vmor %vm991, %vm992
    %v994 = vsel %vm993, %v985, %v990
    %v995 = vmul.f32 %v957, %v984
    %v996 = vmul.f32 %v958, %v984
    %v997 = vmul.f32 %v959, %v984
    %v998 = vmul.f32 %v960, %v984
    %v999 = vmul.f32 %v961, %v984
    %v1000 = vmul.f32 %v962, %v984
    %v1001 = vmul.f32 %v963, %v984
    %v1002 = vmul.f32 %v964, %v984
    %v1003 = vmul.f32 %v965, %v994
    %v1004 = vmul.f32 %v966, %v994
    %v1005 = vmul.f32 %v967, %v994
    %v1006 = vmul.f32 %v968, %v994
    %v1007 = vmul.f32 %v969, %v994
    %v1008 = vmul.f32 %v970, %v994
    %v1009 = vmul.f32 %v971, %v994
    %v1010 = vmul.f32 %v972, %v994
    %1011 = vst [vmem:[#allocation10] sm:$0xff] %v1003
    %1012 = vst [vmem:[#allocation10 + $0x8] sm:$0xff] %v1004
    %1013 = vst [vmem:[#allocation10 + $0x10] sm:$0xff] %v1005
    %1014 = vst [vmem:[#allocation10 + $0x18] sm:$0xff] %v1006
    %1015 = vst [vmem:[#allocation10 + $0x20] sm:$0xff] %v1007
    %1016 = vst [vmem:[#allocation10 + $0x28] sm:$0xff] %v1008
    %1017 = vst [vmem:[#allocation10 + $0x30] sm:$0xff] %v1009
    %1018 = vst [vmem:[#allocation10 + $0x38] sm:$0xff] %v1010
    %v1019 = vpack.c.bf16 %v996, %v995
    %v1020 = vpack.c.bf16 %v998, %v997
    %v1021 = vpack.c.bf16 %v1000, %v999
    %v1022 = vpack.c.bf16 %v1002, %v1001
    %v1023 = vpack.c.bf16 %v1004, %v1003
    %v1024 = vpack.c.bf16 %v1006, %v1005
    %v1025 = vpack.c.bf16 %v1008, %v1007
    %v1026 = vpack.c.bf16 %v1010, %v1009
    %s1027 = scalar_lea.vmem [#allocation7], 192
    %v1028 = vld [vmem:[%s1027] sm:$0xf]
    %v1029 = vld [vmem:[%s1027 + $0x4] sm:$0xf]
    %v1030 = vld [vmem:[%s1027 + $0x8] sm:$0xf]
    %v1031 = vld [vmem:[%s1027 + $0xc] sm:$0xf]
    %v1032 = vld [vmem:[%s1027 + $0x10] sm:$0xf]
    %v1033 = vld [vmem:[%s1027 + $0x14] sm:$0xf]
    %v1034 = vld [vmem:[%s1027 + $0x18] sm:$0xf]
    %v1035 = vld [vmem:[%s1027 + $0x1c] sm:$0xf]
    %v1036 = vld [vmem:[%s1027 + $0x20] sm:$0xf]
    %v1037 = vld [vmem:[%s1027 + $0x24] sm:$0xf]
    %v1038 = vld [vmem:[%s1027 + $0x28] sm:$0xf]
    %v1039 = vld [vmem:[%s1027 + $0x2c] sm:$0xf]
    %v1040 = vld [vmem:[%s1027 + $0x30] sm:$0xf]
    %v1041 = vld [vmem:[%s1027 + $0x34] sm:$0xf]
    %v1042 = vld [vmem:[%s1027 + $0x38] sm:$0xf]
    %v1043 = vld [vmem:[%s1027 + $0x3c] sm:$0xf]
    %s1044 = scalar_lea.vmem [#allocation7], 256
    %v1045 = vld [vmem:[%s1044] sm:$0xf]
    %v1046 = vld [vmem:[%s1044 + $0x4] sm:$0xf]
    %v1047 = vld [vmem:[%s1044 + $0x8] sm:$0xf]
    %v1048 = vld [vmem:[%s1044 + $0xc] sm:$0xf]
    %v1049 = vld [vmem:[%s1044 + $0x10] sm:$0xf]
    %v1050 = vld [vmem:[%s1044 + $0x14] sm:$0xf]
    %v1051 = vld [vmem:[%s1044 + $0x18] sm:$0xf]
    %v1052 = vld [vmem:[%s1044 + $0x1c] sm:$0xf]
    %v1053 = vld [vmem:[%s1044 + $0x20] sm:$0xf]
    %v1054 = vld [vmem:[%s1044 + $0x24] sm:$0xf]
    %v1055 = vld [vmem:[%s1044 + $0x28] sm:$0xf]
    %v1056 = vld [vmem:[%s1044 + $0x2c] sm:$0xf]
    %v1057 = vld [vmem:[%s1044 + $0x30] sm:$0xf]
    %v1058 = vld [vmem:[%s1044 + $0x34] sm:$0xf]
    %v1059 = vld [vmem:[%s1044 + $0x38] sm:$0xf]
    %v1060 = vld [vmem:[%s1044 + $0x3c] sm:$0xf]
    %v1077 = vunpack.c.l.b16 %v1045
    %v1078 = vunpack.c.l.b16 %v1046
    %v1079 = vunpack.c.l.b16 %v1047
    %v1080 = vunpack.c.l.b16 %v1048
    %v1081 = vunpack.c.l.b16 %v1049
    %v1082 = vunpack.c.l.b16 %v1050
    %v1083 = vunpack.c.l.b16 %v1051
    %v1084 = vunpack.c.l.b16 %v1052
    %v1085 = vunpack.c.l.b16 %v1053
    %v1086 = vunpack.c.l.b16 %v1054
    %v1087 = vunpack.c.l.b16 %v1055
    %v1088 = vunpack.c.l.b16 %v1056
    %v1089 = vunpack.c.l.b16 %v1057
    %v1090 = vunpack.c.l.b16 %v1058
    %v1091 = vunpack.c.l.b16 %v1059
    %v1092 = vunpack.c.l.b16 %v1060
    %v1093 = vpack.c.b16 %v1078, %v1077
    %v1094 = vpack.c.b16 %v1080, %v1079
    %v1095 = vpack.c.b16 %v1082, %v1081
    %v1096 = vpack.c.b16 %v1084, %v1083
    %v1097 = vpack.c.b16 %v1086, %v1085
    %v1098 = vpack.c.b16 %v1088, %v1087
    %v1099 = vpack.c.b16 %v1090, %v1089
    %v1100 = vpack.c.b16 %v1092, %v1091
    %1109 = vmatpush.bf16.msra.mxu0 %v1100
    %1110 = vmatpush.bf16.msra.mxu0 %v1099
    %1111 = vmatpush.bf16.msra.mxu0 %v1098
    %1112 = vmatpush.bf16.msra.mxu0 %v1097
    %1113 = vmatpush.bf16.msra.mxu0 %v1096
    %1114 = vmatpush.bf16.msra.mxu0 %v1095
    %1115 = vmatpush.bf16.msra.mxu0 %v1094
    %1116 = vmatpush.bf16.msra.mxu0 %v1093
    %1117 = vmatmul.bf16.gmra.mxu0 %v1023
    %v1118 = vpop.f32.mrf.mxu0
    %v1119 = vadd.f32 0.0, %v1118
    %v1120 = vpop.f32.mrf.mxu0
    %v1121 = vadd.f32 0.0, %v1120
    %1122 = vmatmul.bf16.gmra.mxu0 %v1024
    %v1123 = vpop.f32.mrf.mxu0
    %v1124 = vadd.f32 0.0, %v1123
    %v1125 = vpop.f32.mrf.mxu0
    %v1126 = vadd.f32 0.0, %v1125
    %1127 = vmatmul.bf16.gmra.mxu0 %v1025
    %v1128 = vpop.f32.mrf.mxu0
    %v1129 = vadd.f32 0.0, %v1128
    %v1130 = vpop.f32.mrf.mxu0
    %v1131 = vadd.f32 0.0, %v1130
    %1132 = vmatmul.bf16.gmra.mxu0 %v1026
    %v1133 = vpop.f32.mrf.mxu0
    %v1134 = vadd.f32 0.0, %v1133
    %v1135 = vpop.f32.mrf.mxu0
    %v1136 = vadd.f32 0.0, %v1135
    %1137 = vdwg.mxu0
    %v1154 = vunpack.c.l.b16 %v1028
    %v1155 = vunpack.c.l.b16 %v1029
    %v1156 = vunpack.c.l.b16 %v1030
    %v1157 = vunpack.c.l.b16 %v1031
    %v1158 = vunpack.c.l.b16 %v1032
    %v1159 = vunpack.c.l.b16 %v1033
    %v1160 = vunpack.c.l.b16 %v1034
    %v1161 = vunpack.c.l.b16 %v1035
    %v1162 = vunpack.c.l.b16 %v1036
    %v1163 = vunpack.c.l.b16 %v1037
    %v1164 = vunpack.c.l.b16 %v1038
    %v1165 = vunpack.c.l.b16 %v1039
    %v1166 = vunpack.c.l.b16 %v1040
    %v1167 = vunpack.c.l.b16 %v1041
    %v1168 = vunpack.c.l.b16 %v1042
    %v1169 = vunpack.c.l.b16 %v1043
    %v1170 = vpack.c.b16 %v1155, %v1154
    %v1171 = vpack.c.b16 %v1157, %v1156
    %v1172 = vpack.c.b16 %v1159, %v1158
    %v1173 = vpack.c.b16 %v1161, %v1160
    %v1174 = vpack.c.b16 %v1163, %v1162
    %v1175 = vpack.c.b16 %v1165, %v1164
    %v1176 = vpack.c.b16 %v1167, %v1166
    %v1177 = vpack.c.b16 %v1169, %v1168
    %1186 = vmatpush.bf16.msra.mxu0 %v1177
    %1187 = vmatpush.bf16.msra.mxu0 %v1176
    %1188 = vmatpush.bf16.msra.mxu0 %v1175
    %1189 = vmatpush.bf16.msra.mxu0 %v1174
    %1190 = vmatpush.bf16.msra.mxu0 %v1173
    %1191 = vmatpush.bf16.msra.mxu0 %v1172
    %1192 = vmatpush.bf16.msra.mxu0 %v1171
    %1193 = vmatpush.bf16.msra.mxu0 %v1170
    %1194 = vmatmul.bf16.gmra.mxu0 %v1019
    %v1195 = vpop.f32.mrf.mxu0
    %v1196 = vadd.f32 %v1119, %v1195
    %v1197 = vpop.f32.mrf.mxu0
    %v1198 = vadd.f32 %v1121, %v1197
    %1199 = vmatmul.bf16.gmra.mxu0 %v1020
    %v1200 = vpop.f32.mrf.mxu0
    %v1201 = vadd.f32 %v1124, %v1200
    %v1202 = vpop.f32.mrf.mxu0
    %v1203 = vadd.f32 %v1126, %v1202
    %1204 = vmatmul.bf16.gmra.mxu0 %v1021
    %v1205 = vpop.f32.mrf.mxu0
    %v1206 = vadd.f32 %v1129, %v1205
    %v1207 = vpop.f32.mrf.mxu0
    %v1208 = vadd.f32 %v1131, %v1207
    %1209 = vmatmul.bf16.gmra.mxu0 %v1022
    %v1210 = vpop.f32.mrf.mxu0
    %v1211 = vadd.f32 %v1134, %v1210
    %v1212 = vpop.f32.mrf.mxu0
    %v1213 = vadd.f32 %v1136, %v1212
    %1214 = vdwg.mxu0
    %v1215 = vld [vmem:[#allocation8 + $0x3] sm:$0x1]
    %v1216 = vperm.slane %v1215, 0
    %v1217 = vadd.f32 %v1196, %v1216
    %v1218 = vadd.f32 %v1198, %v1216
    %v1219 = vadd.f32 %v1201, %v1216
    %v1220 = vadd.f32 %v1203, %v1216
    %v1221 = vadd.f32 %v1206, %v1216
    %v1222 = vadd.f32 %v1208, %v1216
    %v1223 = vadd.f32 %v1211, %v1216
    %v1224 = vadd.f32 %v1213, %v1216
    %v1225 = vmax.f32 %v1217, 0.0
    %v1226 = vmax.f32 %v1218, 0.0
    %v1227 = vmax.f32 %v1219, 0.0
    %v1228 = vmax.f32 %v1220, 0.0
    %v1229 = vmax.f32 %v1221, 0.0
    %v1230 = vmax.f32 %v1222, 0.0
    %v1231 = vmax.f32 %v1223, 0.0
    %v1232 = vmax.f32 %v1224, 0.0
    %v1233 = vpack.c.bf16 %v1226, %v1225
    %v1234 = vpack.c.bf16 %v1228, %v1227
    %v1235 = vpack.c.bf16 %v1230, %v1229
    %v1236 = vpack.c.bf16 %v1232, %v1231
    %s1237 = scalar_lea.vmem [#allocation7], 320
    %v1238 = vld [vmem:[%s1237] sm:$0xf]
    %v1239 = vld [vmem:[%s1237 + $0x4] sm:$0xf]
    %v1240 = vld [vmem:[%s1237 + $0x8] sm:$0xf]
    %v1241 = vld [vmem:[%s1237 + $0xc] sm:$0xf]
    %v1242 = vld [vmem:[%s1237 + $0x10] sm:$0xf]
    %v1243 = vld [vmem:[%s1237 + $0x14] sm:$0xf]
    %v1244 = vld [vmem:[%s1237 + $0x18] sm:$0xf]
    %v1245 = vld [vmem:[%s1237 + $0x1c] sm:$0xf]
    %v1246 = vld [vmem:[%s1237 + $0x20] sm:$0xf]
    %v1247 = vld [vmem:[%s1237 + $0x24] sm:$0xf]
    %v1248 = vld [vmem:[%s1237 + $0x28] sm:$0xf]
    %v1249 = vld [vmem:[%s1237 + $0x2c] sm:$0xf]
    %v1250 = vld [vmem:[%s1237 + $0x30] sm:$0xf]
    %v1251 = vld [vmem:[%s1237 + $0x34] sm:$0xf]
    %v1252 = vld [vmem:[%s1237 + $0x38] sm:$0xf]
    %v1253 = vld [vmem:[%s1237 + $0x3c] sm:$0xf]
    %v1254 = vld [vmem:[#allocation8 + $0x4] sm:$0x1]
    %v1255 = vperm.slane %v1254, 0
    %v1272 = vunpack.c.l.b16 %v1238
    %v1273 = vunpack.c.l.b16 %v1239
    %v1274 = vunpack.c.l.b16 %v1240
    %v1275 = vunpack.c.l.b16 %v1241
    %v1276 = vunpack.c.l.b16 %v1242
    %v1277 = vunpack.c.l.b16 %v1243
    %v1278 = vunpack.c.l.b16 %v1244
    %v1279 = vunpack.c.l.b16 %v1245
    %v1280 = vunpack.c.l.b16 %v1246
    %v1281 = vunpack.c.l.b16 %v1247
    %v1282 = vunpack.c.l.b16 %v1248
    %v1283 = vunpack.c.l.b16 %v1249
    %v1284 = vunpack.c.l.b16 %v1250
    %v1285 = vunpack.c.l.b16 %v1251
    %v1286 = vunpack.c.l.b16 %v1252
    %v1287 = vunpack.c.l.b16 %v1253
    %v1288 = vpack.c.b16 %v1273, %v1272
    %v1289 = vpack.c.b16 %v1275, %v1274
    %v1290 = vpack.c.b16 %v1277, %v1276
    %v1291 = vpack.c.b16 %v1279, %v1278
    %v1292 = vpack.c.b16 %v1281, %v1280
    %v1293 = vpack.c.b16 %v1283, %v1282
    %v1294 = vpack.c.b16 %v1285, %v1284
    %v1295 = vpack.c.b16 %v1287, %v1286
    %1304 = vmatpush.bf16.msra.mxu0 %v1295
    %1305 = vmatpush.bf16.msra.mxu0 %v1294
    %1306 = vmatpush.bf16.msra.mxu0 %v1293
    %1307 = vmatpush.bf16.msra.mxu0 %v1292
    %1308 = vmatpush.bf16.msra.mxu0 %v1291
    %1309 = vmatpush.bf16.msra.mxu0 %v1290
    %1310 = vmatpush.bf16.msra.mxu0 %v1289
    %1311 = vmatpush.bf16.msra.mxu0 %v1288
    %1312 = vmatmul.bf16.gmra.mxu0 %v1233
    %v1313 = vpop.f32.mrf.mxu0
    %v1314 = vadd.f32 %v1255, %v1313
    %v1315 = vpop.f32.mrf.mxu0
    %v1316 = vadd.f32 %v1255, %v1315
    %1317 = vmatmul.bf16.gmra.mxu0 %v1234
    %v1318 = vpop.f32.mrf.mxu0
    %v1319 = vadd.f32 %v1255, %v1318
    %v1320 = vpop.f32.mrf.mxu0
    %v1321 = vadd.f32 %v1255, %v1320
    %1322 = vmatmul.bf16.gmra.mxu0 %v1235
    %v1323 = vpop.f32.mrf.mxu0
    %v1324 = vadd.f32 %v1255, %v1323
    %v1325 = vpop.f32.mrf.mxu0
    %v1326 = vadd.f32 %v1255, %v1325
    %1327 = vmatmul.bf16.gmra.mxu0 %v1236
    %v1328 = vpop.f32.mrf.mxu0
    %v1329 = vadd.f32 %v1255, %v1328
    %v1330 = vpop.f32.mrf.mxu0
    %v1331 = vadd.f32 %v1255, %v1330
    %1332 = vdwg.mxu0
    %v1333 = vmax.f32 %v1314, 0.0
    %v1334 = vmax.f32 %v1316, 0.0
    %v1335 = vmax.f32 %v1319, 0.0
    %v1336 = vmax.f32 %v1321, 0.0
    %v1337 = vmax.f32 %v1324, 0.0
    %v1338 = vmax.f32 %v1326, 0.0
    %v1339 = vmax.f32 %v1329, 0.0
    %v1340 = vmax.f32 %v1331, 0.0
    %v1341 = vpack.c.bf16 %v1334, %v1333
    %v1342 = vpack.c.bf16 %v1336, %v1335
    %v1343 = vpack.c.bf16 %v1338, %v1337
    %v1344 = vpack.c.bf16 %v1340, %v1339
    %s1345 = scalar_lea.vmem [#allocation7], 384
    %v1346 = vld [vmem:[%s1345] sm:$0xf]
    %v1347 = vld [vmem:[%s1345 + $0x4] sm:$0xf]
    %v1348 = vld [vmem:[%s1345 + $0x8] sm:$0xf]
    %v1349 = vld [vmem:[%s1345 + $0xc] sm:$0xf]
    %v1350 = vld [vmem:[%s1345 + $0x10] sm:$0xf]
    %v1351 = vld [vmem:[%s1345 + $0x14] sm:$0xf]
    %v1352 = vld [vmem:[%s1345 + $0x18] sm:$0xf]
    %v1353 = vld [vmem:[%s1345 + $0x1c] sm:$0xf]
    %v1354 = vld [vmem:[%s1345 + $0x20] sm:$0xf]
    %v1355 = vld [vmem:[%s1345 + $0x24] sm:$0xf]
    %v1356 = vld [vmem:[%s1345 + $0x28] sm:$0xf]
    %v1357 = vld [vmem:[%s1345 + $0x2c] sm:$0xf]
    %v1358 = vld [vmem:[%s1345 + $0x30] sm:$0xf]
    %v1359 = vld [vmem:[%s1345 + $0x34] sm:$0xf]
    %v1360 = vld [vmem:[%s1345 + $0x38] sm:$0xf]
    %v1361 = vld [vmem:[%s1345 + $0x3c] sm:$0xf]
    %v1362 = vld [vmem:[#allocation8 + $0x5] sm:$0x1]
    %v1363 = vperm.slane %v1362, 0
    %v1380 = vunpack.c.l.b16 %v1346
    %v1381 = vunpack.c.l.b16 %v1347
    %v1382 = vunpack.c.l.b16 %v1348
    %v1383 = vunpack.c.l.b16 %v1349
    %v1384 = vunpack.c.l.b16 %v1350
    %v1385 = vunpack.c.l.b16 %v1351
    %v1386 = vunpack.c.l.b16 %v1352
    %v1387 = vunpack.c.l.b16 %v1353
    %v1388 = vunpack.c.l.b16 %v1354
    %v1389 = vunpack.c.l.b16 %v1355
    %v1390 = vunpack.c.l.b16 %v1356
    %v1391 = vunpack.c.l.b16 %v1357
    %v1392 = vunpack.c.l.b16 %v1358
    %v1393 = vunpack.c.l.b16 %v1359
    %v1394 = vunpack.c.l.b16 %v1360
    %v1395 = vunpack.c.l.b16 %v1361
    %v1396 = vpack.c.b16 %v1381, %v1380
    %v1397 = vpack.c.b16 %v1383, %v1382
    %v1398 = vpack.c.b16 %v1385, %v1384
    %v1399 = vpack.c.b16 %v1387, %v1386
    %v1400 = vpack.c.b16 %v1389, %v1388
    %v1401 = vpack.c.b16 %v1391, %v1390
    %v1402 = vpack.c.b16 %v1393, %v1392
    %v1403 = vpack.c.b16 %v1395, %v1394
    %1412 = vmatpush.bf16.msra.mxu0 %v1403
    %1413 = vmatpush.bf16.msra.mxu0 %v1402
    %1414 = vmatpush.bf16.msra.mxu0 %v1401
    %1415 = vmatpush.bf16.msra.mxu0 %v1400
    %1416 = vmatpush.bf16.msra.mxu0 %v1399
    %1417 = vmatpush.bf16.msra.mxu0 %v1398
    %1418 = vmatpush.bf16.msra.mxu0 %v1397
    %1419 = vmatpush.bf16.msra.mxu0 %v1396
    %1420 = vmatmul.bf16.gmra.mxu0 %v1341
    %v1421 = vpop.f32.mrf.mxu0
    %v1422 = vadd.f32 %v1363, %v1421
    %v1423 = vpop.f32.mrf.mxu0
    %v1424 = vadd.f32 %v1363, %v1423
    %1425 = vmatmul.bf16.gmra.mxu0 %v1342
    %v1426 = vpop.f32.mrf.mxu0
    %v1427 = vadd.f32 %v1363, %v1426
    %v1428 = vpop.f32.mrf.mxu0
    %v1429 = vadd.f32 %v1363, %v1428
    %1430 = vmatmul.bf16.gmra.mxu0 %v1343
    %v1431 = vpop.f32.mrf.mxu0
    %v1432 = vadd.f32 %v1363, %v1431
    %v1433 = vpop.f32.mrf.mxu0
    %v1434 = vadd.f32 %v1363, %v1433
    %1435 = vmatmul.bf16.gmra.mxu0 %v1344
    %v1436 = vpop.f32.mrf.mxu0
    %v1437 = vadd.f32 %v1363, %v1436
    %v1438 = vpop.f32.mrf.mxu0
    %v1439 = vadd.f32 %v1363, %v1438
    %1440 = vdwg.mxu0
    %1441 = vst [vmem:[#allocation13] sm:$0xff] %v1422
    %1442 = vst [vmem:[#allocation13 + $0x8] sm:$0xff] %v1424
    %1443 = vst [vmem:[#allocation13 + $0x10] sm:$0xff] %v1427
    %1444 = vst [vmem:[#allocation13 + $0x18] sm:$0xff] %v1429
    %1445 = vst [vmem:[#allocation13 + $0x20] sm:$0xff] %v1432
    %1446 = vst [vmem:[#allocation13 + $0x28] sm:$0xff] %v1434
    %1447 = vst [vmem:[#allocation13 + $0x30] sm:$0xff] %v1437
    %1448 = vst [vmem:[#allocation13 + $0x38] sm:$0xff] %v1439
    %v1449 = vld [vmem:[#allocation5] sm:$0xf]
    %v1450 = vld [vmem:[#allocation5 + $0x4] sm:$0xf]
    %v1451 = vld [vmem:[#allocation5 + $0x8] sm:$0xf]
    %v1452 = vld [vmem:[#allocation5 + $0xc] sm:$0xf]
    %v1453 = vld [vmem:[#allocation5 + $0x10] sm:$0xf]
    %v1454 = vld [vmem:[#allocation5 + $0x14] sm:$0xf]
    %v1455 = vld [vmem:[#allocation5 + $0x18] sm:$0xf]
    %v1456 = vld [vmem:[#allocation5 + $0x1c] sm:$0xf]
    %s1457 = scalar_lea.vmem [#allocation7], 448
    %v1458 = vld [vmem:[%s1457] sm:$0xf]
    %v1459 = vld [vmem:[%s1457 + $0x4] sm:$0xf]
    %v1460 = vld [vmem:[%s1457 + $0x8] sm:$0xf]
    %v1461 = vld [vmem:[%s1457 + $0xc] sm:$0xf]
    %v1462 = vld [vmem:[%s1457 + $0x10] sm:$0xf]
    %v1463 = vld [vmem:[%s1457 + $0x14] sm:$0xf]
    %v1464 = vld [vmem:[%s1457 + $0x18] sm:$0xf]
    %v1465 = vld [vmem:[%s1457 + $0x1c] sm:$0xf]
    %v1466 = vld [vmem:[%s1457 + $0x20] sm:$0xf]
    %v1467 = vld [vmem:[%s1457 + $0x24] sm:$0xf]
    %v1468 = vld [vmem:[%s1457 + $0x28] sm:$0xf]
    %v1469 = vld [vmem:[%s1457 + $0x2c] sm:$0xf]
    %v1470 = vld [vmem:[%s1457 + $0x30] sm:$0xf]
    %v1471 = vld [vmem:[%s1457 + $0x34] sm:$0xf]
    %v1472 = vld [vmem:[%s1457 + $0x38] sm:$0xf]
    %v1473 = vld [vmem:[%s1457 + $0x3c] sm:$0xf]
    %s1474 = scalar_lea.vmem [#allocation7], 512
    %v1475 = vld [vmem:[%s1474] sm:$0xf]
    %v1476 = vld [vmem:[%s1474 + $0x4] sm:$0xf]
    %v1477 = vld [vmem:[%s1474 + $0x8] sm:$0xf]
    %v1478 = vld [vmem:[%s1474 + $0xc] sm:$0xf]
    %v1479 = vld [vmem:[%s1474 + $0x10] sm:$0xf]
    %v1480 = vld [vmem:[%s1474 + $0x14] sm:$0xf]
    %v1481 = vld [vmem:[%s1474 + $0x18] sm:$0xf]
    %v1482 = vld [vmem:[%s1474 + $0x1c] sm:$0xf]
    %v1483 = vld [vmem:[%s1474 + $0x20] sm:$0xf]
    %v1484 = vld [vmem:[%s1474 + $0x24] sm:$0xf]
    %v1485 = vld [vmem:[%s1474 + $0x28] sm:$0xf]
    %v1486 = vld [vmem:[%s1474 + $0x2c] sm:$0xf]
    %v1487 = vld [vmem:[%s1474 + $0x30] sm:$0xf]
    %v1488 = vld [vmem:[%s1474 + $0x34] sm:$0xf]
    %v1489 = vld [vmem:[%s1474 + $0x38] sm:$0xf]
    %v1490 = vld [vmem:[%s1474 + $0x3c] sm:$0xf]
    %v1499 = vunpack.c.l.b16 %v1449
    %v1500 = vunpack.c.l.b16 %v1450
    %v1501 = vunpack.c.l.b16 %v1451
    %v1502 = vunpack.c.l.b16 %v1452
    %v1503 = vunpack.c.l.b16 %v1453
    %v1504 = vunpack.c.l.b16 %v1454
    %v1505 = vunpack.c.l.b16 %v1455
    %v1506 = vunpack.c.l.b16 %v1456
    %v1507 = vpack.c.b16 %v1500, %v1499
    %v1508 = vpack.c.b16 %v1502, %v1501
    %v1509 = vpack.c.b16 %v1504, %v1503
    %v1510 = vpack.c.b16 %v1506, %v1505
    %v1531 = vunpack.c.l.b16 %v1475
    %v1532 = vunpack.c.l.b16 %v1476
    %v1533 = vunpack.c.l.b16 %v1477
    %v1534 = vunpack.c.l.b16 %v1478
    %v1535 = vunpack.c.l.b16 %v1479
    %v1536 = vunpack.c.l.b16 %v1480
    %v1537 = vunpack.c.l.b16 %v1481
    %v1538 = vunpack.c.l.b16 %v1482
    %v1539 = vunpack.c.l.b16 %v1483
    %v1540 = vunpack.c.l.b16 %v1484
    %v1541 = vunpack.c.l.b16 %v1485
    %v1542 = vunpack.c.l.b16 %v1486
    %v1543 = vunpack.c.l.b16 %v1487
    %v1544 = vunpack.c.l.b16 %v1488
    %v1545 = vunpack.c.l.b16 %v1489
    %v1546 = vunpack.c.l.b16 %v1490
    %v1547 = vpack.c.b16 %v1532, %v1531
    %v1548 = vpack.c.b16 %v1534, %v1533
    %v1549 = vpack.c.b16 %v1536, %v1535
    %v1550 = vpack.c.b16 %v1538, %v1537
    %v1551 = vpack.c.b16 %v1540, %v1539
    %v1552 = vpack.c.b16 %v1542, %v1541
    %v1553 = vpack.c.b16 %v1544, %v1543
    %v1554 = vpack.c.b16 %v1546, %v1545
    %1563 = vmatpush.bf16.msra.mxu0 %v1554
    %1564 = vmatpush.bf16.msra.mxu0 %v1553
    %1565 = vmatpush.bf16.msra.mxu0 %v1552
    %1566 = vmatpush.bf16.msra.mxu0 %v1551
    %1567 = vmatpush.bf16.msra.mxu0 %v1550
    %1568 = vmatpush.bf16.msra.mxu0 %v1549
    %1569 = vmatpush.bf16.msra.mxu0 %v1548
    %1570 = vmatpush.bf16.msra.mxu0 %v1547
    %1571 = vmatmul.bf16.gmra.mxu0 %v1507
    %v1572 = vpop.f32.mrf.mxu0
    %v1573 = vadd.f32 0.0, %v1572
    %v1574 = vpop.f32.mrf.mxu0
    %v1575 = vadd.f32 0.0, %v1574
    %1576 = vmatmul.bf16.gmra.mxu0 %v1508
    %v1577 = vpop.f32.mrf.mxu0
    %v1578 = vadd.f32 0.0, %v1577
    %v1579 = vpop.f32.mrf.mxu0
    %v1580 = vadd.f32 0.0, %v1579
    %1581 = vmatmul.bf16.gmra.mxu0 %v1509
    %v1582 = vpop.f32.mrf.mxu0
    %v1583 = vadd.f32 0.0, %v1582
    %v1584 = vpop.f32.mrf.mxu0
    %v1585 = vadd.f32 0.0, %v1584
    %1586 = vmatmul.bf16.gmra.mxu0 %v1510
    %v1587 = vpop.f32.mrf.mxu0
    %v1588 = vadd.f32 0.0, %v1587
    %v1589 = vpop.f32.mrf.mxu0
    %v1590 = vadd.f32 0.0, %v1589
    %1591 = vdwg.mxu0
    %v1608 = vunpack.c.l.b16 %v1458
    %v1609 = vunpack.c.l.b16 %v1459
    %v1610 = vunpack.c.l.b16 %v1460
    %v1611 = vunpack.c.l.b16 %v1461
    %v1612 = vunpack.c.l.b16 %v1462
    %v1613 = vunpack.c.l.b16 %v1463
    %v1614 = vunpack.c.l.b16 %v1464
    %v1615 = vunpack.c.l.b16 %v1465
    %v1616 = vunpack.c.l.b16 %v1466
    %v1617 = vunpack.c.l.b16 %v1467
    %v1618 = vunpack.c.l.b16 %v1468
    %v1619 = vunpack.c.l.b16 %v1469
    %v1620 = vunpack.c.l.b16 %v1470
    %v1621 = vunpack.c.l.b16 %v1471
    %v1622 = vunpack.c.l.b16 %v1472
    %v1623 = vunpack.c.l.b16 %v1473
    %v1624 = vpack.c.b16 %v1609, %v1608
    %v1625 = vpack.c.b16 %v1611, %v1610
    %v1626 = vpack.c.b16 %v1613, %v1612
    %v1627 = vpack.c.b16 %v1615, %v1614
    %v1628 = vpack.c.b16 %v1617, %v1616
    %v1629 = vpack.c.b16 %v1619, %v1618
    %v1630 = vpack.c.b16 %v1621, %v1620
    %v1631 = vpack.c.b16 %v1623, %v1622
    %1640 = vmatpush.bf16.msra.mxu0 %v1631
    %1641 = vmatpush.bf16.msra.mxu0 %v1630
    %1642 = vmatpush.bf16.msra.mxu0 %v1629
    %1643 = vmatpush.bf16.msra.mxu0 %v1628
    %1644 = vmatpush.bf16.msra.mxu0 %v1627
    %1645 = vmatpush.bf16.msra.mxu0 %v1626
    %1646 = vmatpush.bf16.msra.mxu0 %v1625
    %1647 = vmatpush.bf16.msra.mxu0 %v1624
    %1648 = vmatmul.bf16.gmra.mxu0 %v1019
    %v1649 = vpop.f32.mrf.mxu0
    %v1650 = vadd.f32 %v1573, %v1649
    %v1651 = vpop.f32.mrf.mxu0
    %v1652 = vadd.f32 %v1575, %v1651
    %1653 = vmatmul.bf16.gmra.mxu0 %v1020
    %v1654 = vpop.f32.mrf.mxu0
    %v1655 = vadd.f32 %v1578, %v1654
    %v1656 = vpop.f32.mrf.mxu0
    %v1657 = vadd.f32 %v1580, %v1656
    %1658 = vmatmul.bf16.gmra.mxu0 %v1021
    %v1659 = vpop.f32.mrf.mxu0
    %v1660 = vadd.f32 %v1583, %v1659
    %v1661 = vpop.f32.mrf.mxu0
    %v1662 = vadd.f32 %v1585, %v1661
    %1663 = vmatmul.bf16.gmra.mxu0 %v1022
    %v1664 = vpop.f32.mrf.mxu0
    %v1665 = vadd.f32 %v1588, %v1664
    %v1666 = vpop.f32.mrf.mxu0
    %v1667 = vadd.f32 %v1590, %v1666
    %1668 = vdwg.mxu0
    %v1669 = vld [vmem:[#allocation8 + $0x6] sm:$0x1]
    %v1670 = vperm.slane %v1669, 0
    %v1671 = vadd.f32 %v1650, %v1670
    %v1672 = vadd.f32 %v1652, %v1670
    %v1673 = vadd.f32 %v1655, %v1670
    %v1674 = vadd.f32 %v1657, %v1670
    %v1675 = vadd.f32 %v1660, %v1670
    %v1676 = vadd.f32 %v1662, %v1670
    %v1677 = vadd.f32 %v1665, %v1670
    %v1678 = vadd.f32 %v1667, %v1670
    %vm1679 = vcmp.gt.f32.partialorder %v1671, 0.0
    %vm1680 = vcmp.gt.f32.partialorder %v1672, 0.0
    %vm1681 = vcmp.gt.f32.partialorder %v1673, 0.0
    %vm1682 = vcmp.gt.f32.partialorder %v1674, 0.0
    %vm1683 = vcmp.gt.f32.partialorder %v1675, 0.0
    %vm1684 = vcmp.gt.f32.partialorder %v1676, 0.0
    %vm1685 = vcmp.gt.f32.partialorder %v1677, 0.0
    %vm1686 = vcmp.gt.f32.partialorder %v1678, 0.0
    %v1687 = vmul.f32 %v1671, 0.01
    %v1688 = vmul.f32 %v1672, 0.01
    %v1689 = vmul.f32 %v1673, 0.01
    %v1690 = vmul.f32 %v1674, 0.01
    %v1691 = vmul.f32 %v1675, 0.01
    %v1692 = vmul.f32 %v1676, 0.01
    %v1693 = vmul.f32 %v1677, 0.01
    %v1694 = vmul.f32 %v1678, 0.01
    %v1695 = vsel %vm1679, %v1671, %v1687
    %v1696 = vsel %vm1680, %v1672, %v1688
    %v1697 = vsel %vm1681, %v1673, %v1689
    %v1698 = vsel %vm1682, %v1674, %v1690
    %v1699 = vsel %vm1683, %v1675, %v1691
    %v1700 = vsel %vm1684, %v1676, %v1692
    %v1701 = vsel %vm1685, %v1677, %v1693
    %v1702 = vsel %vm1686, %v1678, %v1694
    %v1703 = vpack.c.bf16 %v1696, %v1695
    %v1704 = vpack.c.bf16 %v1698, %v1697
    %v1705 = vpack.c.bf16 %v1700, %v1699
    %v1706 = vpack.c.bf16 %v1702, %v1701
    %s1707 = scalar_lea.vmem [#allocation7], 576
    %v1708 = vld [vmem:[%s1707] sm:$0xf]
    %v1709 = vld [vmem:[%s1707 + $0x4] sm:$0xf]
    %v1710 = vld [vmem:[%s1707 + $0x8] sm:$0xf]
    %v1711 = vld [vmem:[%s1707 + $0xc] sm:$0xf]
    %v1712 = vld [vmem:[%s1707 + $0x10] sm:$0xf]
    %v1713 = vld [vmem:[%s1707 + $0x14] sm:$0xf]
    %v1714 = vld [vmem:[%s1707 + $0x18] sm:$0xf]
    %v1715 = vld [vmem:[%s1707 + $0x1c] sm:$0xf]
    %v1716 = vld [vmem:[%s1707 + $0x20] sm:$0xf]
    %v1717 = vld [vmem:[%s1707 + $0x24] sm:$0xf]
    %v1718 = vld [vmem:[%s1707 + $0x28] sm:$0xf]
    %v1719 = vld [vmem:[%s1707 + $0x2c] sm:$0xf]
    %v1720 = vld [vmem:[%s1707 + $0x30] sm:$0xf]
    %v1721 = vld [vmem:[%s1707 + $0x34] sm:$0xf]
    %v1722 = vld [vmem:[%s1707 + $0x38] sm:$0xf]
    %v1723 = vld [vmem:[%s1707 + $0x3c] sm:$0xf]
    %v1724 = vld [vmem:[#allocation8 + $0x7] sm:$0x1]
    %v1725 = vperm.slane %v1724, 0
    %v1742 = vunpack.c.l.b16 %v1708
    %v1743 = vunpack.c.l.b16 %v1709
    %v1744 = vunpack.c.l.b16 %v1710
    %v1745 = vunpack.c.l.b16 %v1711
    %v1746 = vunpack.c.l.b16 %v1712
    %v1747 = vunpack.c.l.b16 %v1713
    %v1748 = vunpack.c.l.b16 %v1714
    %v1749 = vunpack.c.l.b16 %v1715
    %v1750 = vunpack.c.l.b16 %v1716
    %v1751 = vunpack.c.l.b16 %v1717
    %v1752 = vunpack.c.l.b16 %v1718
    %v1753 = vunpack.c.l.b16 %v1719
    %v1754 = vunpack.c.l.b16 %v1720
    %v1755 = vunpack.c.l.b16 %v1721
    %v1756 = vunpack.c.l.b16 %v1722
    %v1757 = vunpack.c.l.b16 %v1723
    %v1758 = vpack.c.b16 %v1743, %v1742
    %v1759 = vpack.c.b16 %v1745, %v1744
    %v1760 = vpack.c.b16 %v1747, %v1746
    %v1761 = vpack.c.b16 %v1749, %v1748
    %v1762 = vpack.c.b16 %v1751, %v1750
    %v1763 = vpack.c.b16 %v1753, %v1752
    %v1764 = vpack.c.b16 %v1755, %v1754
    %v1765 = vpack.c.b16 %v1757, %v1756
    %1774 = vmatpush.bf16.msra.mxu0 %v1765
    %1775 = vmatpush.bf16.msra.mxu0 %v1764
    %1776 = vmatpush.bf16.msra.mxu0 %v1763
    %1777 = vmatpush.bf16.msra.mxu0 %v1762
    %1778 = vmatpush.bf16.msra.mxu0 %v1761
    %1779 = vmatpush.bf16.msra.mxu0 %v1760
    %1780 = vmatpush.bf16.msra.mxu0 %v1759
    %1781 = vmatpush.bf16.msra.mxu0 %v1758
    %1782 = vmatmul.bf16.gmra.mxu0 %v1703
    %v1783 = vpop.f32.mrf.mxu0
    %v1784 = vadd.f32 %v1725, %v1783
    %v1785 = vpop.f32.mrf.mxu0
    %v1786 = vadd.f32 %v1725, %v1785
    %1787 = vmatmul.bf16.gmra.mxu0 %v1704
    %v1788 = vpop.f32.mrf.mxu0
    %v1789 = vadd.f32 %v1725, %v1788
    %v1790 = vpop.f32.mrf.mxu0
    %v1791 = vadd.f32 %v1725, %v1790
    %1792 = vmatmul.bf16.gmra.mxu0 %v1705
    %v1793 = vpop.f32.mrf.mxu0
    %v1794 = vadd.f32 %v1725, %v1793
    %v1795 = vpop.f32.mrf.mxu0
    %v1796 = vadd.f32 %v1725, %v1795
    %1797 = vmatmul.bf16.gmra.mxu0 %v1706
    %v1798 = vpop.f32.mrf.mxu0
    %v1799 = vadd.f32 %v1725, %v1798
    %v1800 = vpop.f32.mrf.mxu0
    %v1801 = vadd.f32 %v1725, %v1800
    %1802 = vdwg.mxu0
    %vm1803 = vcmp.gt.f32.partialorder %v1784, 0.0
    %vm1804 = vcmp.gt.f32.partialorder %v1786, 0.0
    %vm1805 = vcmp.gt.f32.partialorder %v1789, 0.0
    %vm1806 = vcmp.gt.f32.partialorder %v1791, 0.0
    %vm1807 = vcmp.gt.f32.partialorder %v1794, 0.0
    %vm1808 = vcmp.gt.f32.partialorder %v1796, 0.0
    %vm1809 = vcmp.gt.f32.partialorder %v1799, 0.0
    %vm1810 = vcmp.gt.f32.partialorder %v1801, 0.0
    %v1811 = vmul.f32 %v1784, 0.01
    %v1812 = vmul.f32 %v1786, 0.01
    %v1813 = vmul.f32 %v1789, 0.01
    %v1814 = vmul.f32 %v1791, 0.01
    %v1815 = vmul.f32 %v1794, 0.01
    %v1816 = vmul.f32 %v1796, 0.01
    %v1817 = vmul.f32 %v1799, 0.01
    %v1818 = vmul.f32 %v1801, 0.01
    %v1819 = vsel %vm1803, %v1784, %v1811
    %v1820 = vsel %vm1804, %v1786, %v1812
    %v1821 = vsel %vm1805, %v1789, %v1813
    %v1822 = vsel %vm1806, %v1791, %v1814
    %v1823 = vsel %vm1807, %v1794, %v1815
    %v1824 = vsel %vm1808, %v1796, %v1816
    %v1825 = vsel %vm1809, %v1799, %v1817
    %v1826 = vsel %vm1810, %v1801, %v1818
    %v1827 = vpack.c.bf16 %v1820, %v1819
    %v1828 = vpack.c.bf16 %v1822, %v1821
    %v1829 = vpack.c.bf16 %v1824, %v1823
    %v1830 = vpack.c.bf16 %v1826, %v1825
    %s1831 = scalar_lea.vmem [#allocation7], 640
    %v1832 = vld [vmem:[%s1831] sm:$0xf]
    %v1833 = vld [vmem:[%s1831 + $0x4] sm:$0xf]
    %v1834 = vld [vmem:[%s1831 + $0x8] sm:$0xf]
    %v1835 = vld [vmem:[%s1831 + $0xc] sm:$0xf]
    %v1836 = vld [vmem:[%s1831 + $0x10] sm:$0xf]
    %v1837 = vld [vmem:[%s1831 + $0x14] sm:$0xf]
    %v1838 = vld [vmem:[%s1831 + $0x18] sm:$0xf]
    %v1839 = vld [vmem:[%s1831 + $0x1c] sm:$0xf]
    %v1840 = vld [vmem:[%s1831 + $0x20] sm:$0xf]
    %v1841 = vld [vmem:[%s1831 + $0x24] sm:$0xf]
    %v1842 = vld [vmem:[%s1831 + $0x28] sm:$0xf]
    %v1843 = vld [vmem:[%s1831 + $0x2c] sm:$0xf]
    %v1844 = vld [vmem:[%s1831 + $0x30] sm:$0xf]
    %v1845 = vld [vmem:[%s1831 + $0x34] sm:$0xf]
    %v1846 = vld [vmem:[%s1831 + $0x38] sm:$0xf]
    %v1847 = vld [vmem:[%s1831 + $0x3c] sm:$0xf]
    %v1848 = vld [vmem:[#allocation8 + $0x8] sm:$0x1]
    %v1849 = vperm.slane %v1848, 0
    %v1866 = vunpack.c.l.b16 %v1832
    %v1867 = vunpack.c.l.b16 %v1833
    %v1868 = vunpack.c.l.b16 %v1834
    %v1869 = vunpack.c.l.b16 %v1835
    %v1870 = vunpack.c.l.b16 %v1836
    %v1871 = vunpack.c.l.b16 %v1837
    %v1872 = vunpack.c.l.b16 %v1838
    %v1873 = vunpack.c.l.b16 %v1839
    %v1874 = vunpack.c.l.b16 %v1840
    %v1875 = vunpack.c.l.b16 %v1841
    %v1876 = vunpack.c.l.b16 %v1842
    %v1877 = vunpack.c.l.b16 %v1843
    %v1878 = vunpack.c.l.b16 %v1844
    %v1879 = vunpack.c.l.b16 %v1845
    %v1880 = vunpack.c.l.b16 %v1846
    %v1881 = vunpack.c.l.b16 %v1847
    %v1882 = vpack.c.b16 %v1867, %v1866
    %v1883 = vpack.c.b16 %v1869, %v1868
    %v1884 = vpack.c.b16 %v1871, %v1870
    %v1885 = vpack.c.b16 %v1873, %v1872
    %v1886 = vpack.c.b16 %v1875, %v1874
    %v1887 = vpack.c.b16 %v1877, %v1876
    %v1888 = vpack.c.b16 %v1879, %v1878
    %v1889 = vpack.c.b16 %v1881, %v1880
    %1898 = vmatpush.bf16.msra.mxu0 %v1889
    %1899 = vmatpush.bf16.msra.mxu0 %v1888
    %1900 = vmatpush.bf16.msra.mxu0 %v1887
    %1901 = vmatpush.bf16.msra.mxu0 %v1886
    %1902 = vmatpush.bf16.msra.mxu0 %v1885
    %1903 = vmatpush.bf16.msra.mxu0 %v1884
    %1904 = vmatpush.bf16.msra.mxu0 %v1883
    %1905 = vmatpush.bf16.msra.mxu0 %v1882
    %1906 = vmatmul.bf16.gmra.mxu0 %v1827
    %v1907 = vpop.f32.mrf.mxu0
    %v1908 = vadd.f32 %v1849, %v1907
    %v1909 = vpop.f32.mrf.mxu0
    %v1910 = vadd.f32 %v1849, %v1909
    %1911 = vmatmul.bf16.gmra.mxu0 %v1828
    %v1912 = vpop.f32.mrf.mxu0
    %v1913 = vadd.f32 %v1849, %v1912
    %v1914 = vpop.f32.mrf.mxu0
    %v1915 = vadd.f32 %v1849, %v1914
    %1916 = vmatmul.bf16.gmra.mxu0 %v1829
    %v1917 = vpop.f32.mrf.mxu0
    %v1918 = vadd.f32 %v1849, %v1917
    %v1919 = vpop.f32.mrf.mxu0
    %v1920 = vadd.f32 %v1849, %v1919
    %1921 = vmatmul.bf16.gmra.mxu0 %v1830
    %v1922 = vpop.f32.mrf.mxu0
    %v1923 = vadd.f32 %v1849, %v1922
    %v1924 = vpop.f32.mrf.mxu0
    %v1925 = vadd.f32 %v1849, %v1924
    %1926 = vdwg.mxu0
    %1927 = vst [vmem:[#allocation11] sm:$0xff] %v1908
    %1928 = vst [vmem:[#allocation11 + $0x8] sm:$0xff] %v1910
    %1929 = vst [vmem:[#allocation11 + $0x10] sm:$0xff] %v1913
    %1930 = vst [vmem:[#allocation11 + $0x18] sm:$0xff] %v1915
    %1931 = vst [vmem:[#allocation11 + $0x20] sm:$0xff] %v1918
    %1932 = vst [vmem:[#allocation11 + $0x28] sm:$0xff] %v1920
    %1933 = vst [vmem:[#allocation11 + $0x30] sm:$0xff] %v1923
    %1934 = vst [vmem:[#allocation11 + $0x38] sm:$0xff] %v1925
    // Predicated region
    $region34: #{tpu_custom_call.1} parent=1 // pred_check
      _
    $region35: #{tpu_custom_call.1} parent=1 // pred_check_branch
      %1936 = sbr.rel (0) target = $region37
    $region36: #{tpu_custom_call.1} parent=1 // pred_region
      %1938 = vsyncadd [#allocation4], 0
      %s1939 = sshll.u32 [#allocation10], 4
      %s1940 = int_to_ptr.vmem [resolvable:$true] %s1939
      %s1941 = sshll.u32 %s4, 4
      %s1942 = int_to_ptr.hbm [resolvable:$true] %s1941
      %1947 = dma.vmem_to_hbm [thread:$0]  %s1940, 1024, %s1942, [#allocation4], 128, 128, 8
    $region37: #{tpu_custom_call.1} parent=1 // pred_fallthru
      _
    // Predicated region
    $region38: #{tpu_custom_call.1} parent=1 // pred_check
      _
    $region39: #{tpu_custom_call.1} parent=1 // pred_check_branch
      %1949 = sbr.rel (0) target = $region41
    $region40: #{tpu_custom_call.1} parent=1 // pred_region
      %1951 = vsyncadd [#allocation12], 0
      %s1952 = sshll.u32 [#allocation11], 4
      %s1953 = int_to_ptr.vmem [resolvable:$true] %s1952
      %s1954 = sshll.u32 %s5, 4
      %s1955 = int_to_ptr.hbm [resolvable:$true] %s1954
      %1960 = dma.vmem_to_hbm [thread:$0]  %s1953, 1024, %s1955, [#allocation12], 128, 128, 8
    $region41: #{tpu_custom_call.1} parent=1 // pred_fallthru
      _
    // Predicated region
    $region42: #{tpu_custom_call.1} parent=1 // pred_check
      _
    $region43: #{tpu_custom_call.1} parent=1 // pred_check_branch
      %1962 = sbr.rel (0) target = $region45
    $region44: #{tpu_custom_call.1} parent=1 // pred_region
      %1964 = vsyncadd [#allocation12], 0
      %s1965 = sshll.u32 [#allocation13], 4
      %s1966 = int_to_ptr.vmem [resolvable:$true] %s1965
      %s1967 = sshll.u32 %s6, 4
      %s1968 = int_to_ptr.hbm [resolvable:$true] %s1967
      %1973 = dma.vmem_to_hbm [thread:$0]  %s1966, 1024, %s1968, [#allocation12], 128, 128, 8
    $region45: #{tpu_custom_call.1} parent=1 // pred_fallthru
      _
    // Predicated region
    $region46: #{tpu_custom_call.1} parent=1 // pred_check
      _
    $region47: #{tpu_custom_call.1} parent=1 // pred_check_branch
      %1975 = sbr.rel (0) target = $region49
    $region48: #{tpu_custom_call.1} parent=1 // pred_region
      %1977 = dma.done [#allocation4], 1024
    $region49: #{tpu_custom_call.1} parent=1 // pred_fallthru
      _
    // Predicated region
    $region50: #{tpu_custom_call.1} parent=1 // pred_check
      _
    $region51: #{tpu_custom_call.1} parent=1 // pred_check_branch
      %1979 = sbr.rel (0) target = $region53
    $region52: #{tpu_custom_call.1} parent=1 // pred_region
      %1981 = dma.done [#allocation12], 1024
    $region53: #{tpu_custom_call.1} parent=1 // pred_fallthru
      _
    // Predicated region
    $region54: #{tpu_custom_call.1} parent=1 // pred_check
      _
    $region55: #{tpu_custom_call.1} parent=1 // pred_check_branch
      %1983 = sbr.rel (0) target = $region57
    $region56: #{tpu_custom_call.1} parent=1 // pred_region
      %1985 = dma.done [#allocation12], 1024
    $region57: #{tpu_custom_call.1} parent=1 // pred_fallthru
      _
    %1986 = vsyncpa [#allocation3], 1
    %1987 = vsyncpa [#allocation6], 1
    %1988 = vsyncpa [#allocation9], 1
    %1989 = vsyncpa [#allocation4], 1
    %1990 = vsyncpa [#allocation12], 1

</llo_original>
